<compile_context>
chip_gen: v6e
topology: v6e:2x2x1
jax: 0.10.0
libtpu: 0.0.40
codegen_flags: <defaults>
</compile_context>

<pallas_src>
import math
from functools import partial

import jax
import jax.numpy as jnp
from jax import lax
from jax.experimental import pallas as pl
from jax.experimental.pallas import tpu as pltpu

LN_EPS = 1e-5  # torch nn.LayerNorm default


class Config:
    dim_observation = 6
    dim_action = 3
    dim_embed = 32      # must equal dim_hidden (the reference implicitly requires it)
    dim_hidden = 32
    dim_head = 4
    num_heads = 8
    dim_ffn = 64
    num_layers = 2
    dropout = 0.0       # inference: dropout == identity
    action_tanh = True
    max_len = 16
    seq_len = 4


# ----------------------------------------------------------------------------- kernel
def _ln(x, g, b):
    mu = jnp.mean(x, axis=-1, keepdims=True)
    var = jnp.mean(jnp.square(x - mu), axis=-1, keepdims=True)
    return (x - mu) * lax.rsqrt(var + LN_EPS) * g + b


def _fused_forward_kernel(data_ref, wcomb_ref, wqkv_ref, wo_ref, w1_ref, w2_ref,
                          vecs_ref, consts_ref, out_ref,
                          *, batch, seq_len, dim, dim_head, dim_ffn, dim_action,
                          in_pad, num_layers, action_tanh, coff):
    B, D, dff, da = batch, dim, dim_ffn, dim_action
    T = 2 * seq_len
    R = B * T
    scale = 1.0 / math.sqrt(dim_head)
    f32, bf16 = jnp.float32, jnp.bfloat16

    def const(name):                      # static slice out of the packed constant tensor
        r0, nr, nc = coff[name]
        return consts_ref[r0:r0 + nr, 0:nc]

    def vec(i, w):                        # static row out of the packed bias/LN tensor
        return vecs_ref[i:i + 1, 0:w]

    # ---- packed inputs: tokens / positional+bias addend / key mask ----
    inp = data_ref[0:R, 0:in_pad]                      # (R, in_pad) interleaved obs/act
    addend = data_ref[R:2 * R, 0:D]                    # (R, D) pos-enc + token bias
    maskc = data_ref[2 * R:3 * R, 0:1]                 # (R, 1) 1.0 == masked key position
    keep = 1.0 - maskc

    # token embeddings (bf16 MXU inputs, f32 accumulation)
    x = jnp.dot(inp.astype(bf16), wcomb_ref[...], preferred_element_type=f32) + addend
    x = _ln(x, vec(0, D), vec(1, D))

    hmask_wide = const("hmask_wide")      # (D, B*D)  per-head block mask, tiled per batch
    blockmask = const("blockmask")        # (R, B*D)  1 where lane-block == row's batch
    fold_bd = const("fold_bd")            # (B*D, D)  stacked identities (block fold)
    batchones = const("batchones")        # (R, R)    1 where rows share a batch

    for l in range(num_layers):
        base = 2 + 5 * l
        xb = x.astype(bf16)
        q = jnp.dot(xb, wqkv_ref[l, 0], preferred_element_type=f32)
        k = jnp.dot(xb, wqkv_ref[l, 1], preferred_element_type=f32)
        v = jnp.dot(xb, wqkv_ref[l, 2], preferred_element_type=f32)
        vu = v * keep                      # unmasked-key contribution
        vm = v * maskc                     # masked (-1e9 filled) key contribution

        # Lane-packed attention, all batches at once (reference quirk kept: raw masked
        # scores -- not softmax probabilities -- multiply V):
        #   attn = scale * Q @ ((K^T @ Vu) ∘ head_mask)  +  (-1e9) * Σ_masked V
        vu_wide = jnp.concatenate([vu] * B, axis=1) * blockmask            # (R, B*D)
        ktv_wide = lax.dot_general(k, vu_wide, (((0,), (0,)), ((), ())),
                                   preferred_element_type=f32)             # (D, B*D)
        term_wide = jnp.dot(q, ktv_wide * hmask_wide,
                            preferred_element_type=f32)                    # (R, B*D)
        term_sel = jnp.dot(term_wide * blockmask, fold_bd,
                           preferred_element_type=f32)                     # (R, D)
        corr = jnp.dot(batchones, vm, preferred_element_type=f32) * (-1.0e9)
        attn = scale * term_sel + corr                                     # (R, D), ~1e9

        # keep the ~1e9-magnitude path in f32 (review correctness note)
        attn_out = jnp.dot(attn, wo_ref[l], preferred_element_type=f32) + vec(base, D)
        h1 = _ln(x + attn_out, vec(base + 1, D), vec(base + 2, D))
        f = jnp.dot(h1.astype(bf16), w1_ref[l],
                    preferred_element_type=f32) + vec(base + 3, dff)
        f = 0.5 * f * (1.0 + lax.erf(f * (1.0 / math.sqrt(2.0))))          # exact GELU
        # reference quirk kept: the layer returns ffn_out (no residual / no layer_norm2)
        x = jnp.dot(f.astype(bf16), w2_ref[l],
                    preferred_element_type=f32) + vec(base + 4, D)

    # ---- prediction head on the odd (action) tokens, expressed as dense matmuls ----
    p = jnp.dot(x.astype(bf16), const("wflat").astype(bf16),
                preferred_element_type=f32)                                 # (R, T*da)
    r = jnp.dot(const("bsum"), p * const("dsel"),
                preferred_element_type=f32)                                 # (B, T*da)
    y = jnp.dot(r, const("fold_head"),
                preferred_element_type=f32) + vec(2 + 5 * num_layers, da)   # (B, da)
    if action_tanh:
        y = jnp.tanh(y)
    out_ref[...] = y


# ----------------------------------------------------------------------------- glue
def positional_encoding(max_len, dim_embed):
    pos = jnp.arange(max_len, dtype=jnp.float32)[:, None]
    div = jnp.exp(jnp.arange(0, dim_embed, 2, dtype=jnp.float32)
                  * (-math.log(10000.0) / dim_embed))
    pe = jnp.zeros((max_len, dim_embed), jnp.float32)
    pe = pe.at[:, 0::2].set(jnp.sin(pos * div))
    pe = pe.at[:, 1::2].set(jnp.cos(pos * div))
    return pe


def init_params(cfg, key):
    E, D, dff = cfg.dim_embed, cfg.dim_hidden, cfg.dim_ffn
    S, da, do = cfg.seq_len, cfg.dim_action, cfg.dim_observation
    keys = iter(jax.random.split(key, 8 + 16 * cfg.num_layers))

    def dense(shape, scale=0.02):
        return scale * jax.random.normal(next(keys), shape, dtype=jnp.float32)

    params = {
        "w_obs_t": dense((do, E)), "b_obs": dense((1, E)),
        "w_act_t": dense((da, E)), "b_act": dense((1, E)),
        "ln_g": jnp.ones((1, D), jnp.float32), "ln_b": jnp.zeros((1, D), jnp.float32),
        "w_pred_t": dense((S * D, da)), "b_pred": dense((1, da)),
        "layers": [],
    }
    for _ in range(cfg.num_layers):
        params["layers"].append({
            "wq_t": dense((D, D)), "wk_t": dense((D, D)), "wv_t": dense((D, D)),
            "wo_t": dense((D, D)), "bo": dense((1, D)),
            "ln1_g": jnp.ones((1, D), jnp.float32), "ln1_b": jnp.zeros((1, D), jnp.float32),
            "w1_t": dense((D, dff)), "b1": dense((1, dff)),
            "w2_t": dense((dff, D)), "b2": dense((1, D)),
        })
    return params


def _pack_consts(mats):
    """Pack named 2-D f32 matrices into one (rows, W) tensor; 8-row-aligned sections,
    every section starting at lane 0.  Returns (tensor, {name: (row0, nrows, ncols)})."""
    W = max(int(m.shape[1]) for m in mats.values())
    blocks, coff, off = [], {}, 0
    for name, m in mats.items():
        r, c = int(m.shape[0]), int(m.shape[1])
        rp = (-r) % 8
        blocks.append(jnp.pad(m.astype(jnp.float32), ((0, rp), (0, W - c))))
        coff[name] = (off, r, c)
        off += r + rp
    return jnp.concatenate(blocks, axis=0), coff


def gpt2_forward(params, cfg, observations, actions, attn_mask=None):
    B, S, do = observations.shape
    da = actions.shape[-1]
    T = 2 * S
    R = B * T
    D, E, dh, dff, L = (cfg.dim_hidden, cfg.dim_embed, cfg.dim_head,
                        cfg.dim_ffn, cfg.num_layers)
    IN_PAD = 16
    assert E == D and B * D <= 128 and do + da <= IN_PAD <= D

    if attn_mask is None:
        attn_mask = jnp.ones((B, S), dtype=jnp.int32)
    inv = jnp.invert(attn_mask)                                    # torch `~attn_mask`
    stacked = jnp.stack([inv, inv], axis=2).reshape(B, T)
    mask_col = (stacked != 0).astype(jnp.float32).reshape(R, 1)

    # interleaved, zero-padded token inputs (layout plumbing only; all math is in-kernel)
    obs_p = jnp.pad(observations, ((0, 0), (0, 0), (0, IN_PAD - do)))
    act_p = jnp.pad(actions, ((0, 0), (0, 0), (do, IN_PAD - do - da)))
    inp = jnp.stack([obs_p, act_p], axis=2).reshape(R, IN_PAD)

    pe = positional_encoding(cfg.max_len, E)[:S]
    addend = jnp.stack([pe + params["b_obs"], pe + params["b_act"]], axis=1)
    addend = jnp.tile(addend.reshape(T, E), (B, 1))                # (R, E)

    # operand 1: tokens / addend / key-mask packed along sublanes -> one DMA descriptor
    data = jnp.concatenate([
        jnp.pad(inp, ((0, 0), (0, D - IN_PAD))),
        addend,
        jnp.pad(mask_col, ((0, 0), (0, D - 1))),
    ], axis=0)                                                     # (3R, D) f32

    # operand 2: padded combined embedding weight (bf16 MXU input, halves DMA bytes)
    w_comb = jnp.concatenate([params["w_obs_t"], params["w_act_t"]], axis=0)
    w_comb = jnp.pad(w_comb, ((0, IN_PAD - do - da), (0, 0))).astype(jnp.bfloat16)

    # operands 3-6: stacked per-layer weights (bf16 except wo, which sees ~1e9 activations)
    layers = params["layers"]
    wqkv = jnp.stack([jnp.stack([lp["wq_t"], lp["wk_t"], lp["wv_t"]])
                      for lp in layers]).astype(jnp.bfloat16)      # (L,3,D,D)
    wo = jnp.stack([lp["wo_t"] for lp in layers])                  # (L,D,D) f32
    w1 = jnp.stack([lp["w1_t"] for lp in layers]).astype(jnp.bfloat16)
    w2 = jnp.stack([lp["w2_t"] for lp in layers]).astype(jnp.bfloat16)

    # operand 7: all tiny LN/bias vectors packed into one tensor -> one DMA descriptor
    WV = max(D, dff)

    def row(v):
        v = jnp.asarray(v, jnp.float32).reshape(1, -1)
        return jnp.pad(v, ((0, 0), (0, WV - v.shape[1])))

    vec_rows = [row(params["ln_g"]), row(params["ln_b"])]
    for lp in layers:
        vec_rows += [row(lp["bo"]), row(lp["ln1_g"]), row(lp["ln1_b"]),
                     row(lp["b1"]), row(lp["b2"])]
    vec_rows.append(row(params["b_pred"]))
    vecs = jnp.concatenate(vec_rows, axis=0)
    vecs = jnp.pad(vecs, ((0, (-vecs.shape[0]) % 8), (0, 0)))

    # operand 8: constant selection / mask matrices packed into one tensor
    head_id = jnp.arange(D) // dh
    hmask = (head_id[:, None] == head_id[None, :]).astype(jnp.float32)       # (D, D)
    rowb = jnp.arange(R) // T
    colb = jnp.arange(B * D) // D
    blockmask = (rowb[:, None] == colb[None, :]).astype(jnp.float32)         # (R, B*D)
    batchones = (rowb[:, None] == rowb[None, :]).astype(jnp.float32)         # (R, R)
    wp3 = params["w_pred_t"].reshape(S, D, da)
    wflat = jnp.zeros((D, T, da), jnp.float32)
    wflat = wflat.at[:, 1::2, :].set(jnp.transpose(wp3, (1, 0, 2))).reshape(D, T * da)
    consts, coff = _pack_consts({
        "hmask_wide": jnp.tile(hmask, (1, B)),                               # (D, B*D)
        "blockmask": blockmask,                                              # (R, B*D)
        "fold_bd": jnp.tile(jnp.eye(D, dtype=jnp.float32), (B, 1)),          # (B*D, D)
        "batchones": batchones,                                              # (R, R)
        "wflat": wflat,                                                      # (D, T*da)
        "dsel": jnp.tile(jnp.repeat(jnp.eye(T, dtype=jnp.float32), da, axis=1), (B, 1)),
        "bsum": jnp.repeat(jnp.eye(B, dtype=jnp.float32), T, axis=1),        # (B, R)
        "fold_head": jnp.tile(jnp.eye(da, dtype=jnp.float32), (T, 1)),       # (T*da, da)
    })

    operands = (data, w_comb, wqkv, wo, w1, w2, vecs, consts)
    vmem = pl.BlockSpec(memory_space=pltpu.MemorySpace.VMEM)
    kern = partial(_fused_forward_kernel, batch=B, seq_len=S, dim=D, dim_head=dh,
                   dim_ffn=dff, dim_action=da, in_pad=IN_PAD,
                   num_layers=L, action_tanh=cfg.action_tanh, coff=coff)
    return pl.pallas_call(
        kern,
        out_shape=jax.ShapeDtypeStruct((B, da), jnp.float32),
        in_specs=[vmem] * len(operands),
        out_specs=vmem,
        compiler_params=pltpu.CompilerParams(vmem_limit_bytes=8 * 1024 * 1024),
    )(*operands)


# ----------------------------------------------------------------------------- pure-JAX reference
def _ln_ref(x, g, b):
    mu = jnp.mean(x, axis=-1, keepdims=True)
    var = jnp.mean(jnp.square(x - mu), axis=-1, keepdims=True)
    return (x - mu) / jnp.sqrt(var + LN_EPS) * g + b


def gpt2_reference(params, cfg, observations, actions, attn_mask=None):
    B, S = observations.shape[:2]
    T = 2 * S
    if attn_mask is None:
        attn_mask = jnp.ones((B, S), dtype=jnp.int32)
    inv = jnp.invert(attn_mask)
    stacked_mask = jnp.stack([inv, inv], axis=2).reshape(B, T)
    key_mask = (stacked_mask != 0)[:, None, None, :]

    pe = positional_encoding(cfg.max_len, cfg.dim_embed)[:S]
    oe = observations @ params["w_obs_t"] + params["b_obs"] + pe
    ae = actions @ params["w_act_t"] + params["b_act"] + pe
    x = jnp.stack([oe, ae], axis=2).reshape(B, T, cfg.dim_hidden)
    x = _ln_ref(x, params["ln_g"], params["ln_b"])
    H, dh = cfg.num_heads, cfg.dim_head
    for lp in params["layers"]:
        q = (x @ lp["wq_t"]).reshape(B, T, H, dh).transpose(0, 2, 1, 3)
        k = (x @ lp["wk_t"]).reshape(B, T, H, dh).transpose(0, 2, 1, 3)
        v = (x @ lp["wv_t"]).reshape(B, T, H, dh).transpose(0, 2, 1, 3)
        a = jnp.einsum("bhtd,bhsd->bhts", q, k) / math.sqrt(dh)
        a = jnp.where(key_mask, -1.0e9, a)
        av = jnp.einsum("bhts,bhsd->bhtd", a, v)        # raw masked scores (not softmax)
        av = av.transpose(0, 2, 1, 3).reshape(B, T, H * dh)
        h = _ln_ref(x + av @ lp["wo_t"] + lp["bo"], lp["ln1_g"], lp["ln1_b"])
        f = h @ lp["w1_t"] + lp["b1"]
        f = 0.5 * f * (1.0 + lax.erf(f / math.sqrt(2.0)))
        x = f @ lp["w2_t"] + lp["b2"]
    y = x[:, 1::2, :].reshape(B, S * cfg.dim_hidden) @ params["w_pred_t"] + params["b_pred"]
    return jnp.tanh(y) if cfg.action_tanh else y


if __name__ == "__main__":
    import numpy as np

    cfg = Config()
    key = jax.random.PRNGKey(0)
    kp, ko, ka = jax.random.split(key, 3)
    params = init_params(cfg, kp)

    batch = 2
    observations = jax.random.normal(ko, (batch, cfg.seq_len, cfg.dim_observation), jnp.float32)
    actions = jax.random.normal(ka, (batch, cfg.seq_len, cfg.dim_action), jnp.float32)

    out = jax.block_until_ready(gpt2_forward(params, cfg, observations, actions))
    ref = jax.block_until_ready(gpt2_reference(params, cfg, observations, actions))

    assert out.shape == (batch, cfg.dim_action)
    assert bool(jnp.all(jnp.isfinite(out)))
    np.testing.assert_allclose(np.asarray(out), np.asarray(ref), rtol=5e-2, atol=5e-2)
    print("KERNEL_OK")
</pallas_src>

<mosaic_0001>
module attributes {stable_mosaic.version = 11 : i64} {
  func.func @_fused_forward_kernel(%arg0: memref<48x32xf32, #tpu.memory_space<vmem>>, %arg1: memref<16x32xbf16, #tpu.memory_space<vmem>>, %arg2: memref<2x3x32x32xbf16, #tpu.memory_space<vmem>>, %arg3: memref<2x32x32xf32, #tpu.memory_space<vmem>>, %arg4: memref<2x32x64xbf16, #tpu.memory_space<vmem>>, %arg5: memref<2x64x32xbf16, #tpu.memory_space<vmem>>, %arg6: memref<16x64xf32, #tpu.memory_space<vmem>>, %arg7: memref<208x64xf32, #tpu.memory_space<vmem>>, %arg8: memref<2x3xf32, #tpu.memory_space<vmem>>) attributes {dimension_semantics = [], scalar_prefetch = 0 : i64, scratch_operands = 0 : i64, tpu.core_type = #tpu.core_type<tc>} {
    %c0 = arith.constant 0 : index
    %c0_0 = arith.constant 0 : index
    %0 = vector.load %arg0[%c0, %c0_0] : memref<48x32xf32, #tpu.memory_space<vmem>>, vector<16x16xf32>
    %c16 = arith.constant 16 : index
    %c0_1 = arith.constant 0 : index
    %1 = vector.load %arg0[%c16, %c0_1] : memref<48x32xf32, #tpu.memory_space<vmem>>, vector<16x32xf32>
    %c32 = arith.constant 32 : index
    %c0_2 = arith.constant 0 : index
    %2 = vector.load %arg0[%c32, %c0_2] : memref<48x32xf32, #tpu.memory_space<vmem>>, vector<16x1xf32>
    %cst = arith.constant 1.000000e+00 : f32
    %3 = vector.broadcast %cst : f32 to vector<16x1xf32>
    %4 = arith.subf %3, %2 : vector<16x1xf32>
    %5 = arith.truncf %0 : vector<16x16xf32> to vector<16x16xbf16>
    %c0_3 = arith.constant 0 : index
    %c0_4 = arith.constant 0 : index
    %6 = vector.load %arg1[%c0_3, %c0_4] : memref<16x32xbf16, #tpu.memory_space<vmem>>, vector<16x32xbf16>
    %cst_5 = arith.constant dense<0.000000e+00> : vector<16x32xf32>
    %7 = tpu.matmul %5, %6, %cst_5 {dimension_numbers = #tpu.dot_dimension_numbers<[1], [0], [0], [1], [0, 0, 1, 1], [], []>} : vector<16x16xbf16>, vector<16x32xbf16>, vector<16x32xf32> -> vector<16x32xf32>
    %8 = arith.addf %7, %1 : vector<16x32xf32>
    %c0_6 = arith.constant 0 : index
    %c0_7 = arith.constant 0 : index
    %9 = vector.load %arg6[%c0_6, %c0_7] : memref<16x64xf32, #tpu.memory_space<vmem>>, vector<1x32xf32>
    %c1 = arith.constant 1 : index
    %c0_8 = arith.constant 0 : index
    %10 = vector.load %arg6[%c1, %c0_8] : memref<16x64xf32, #tpu.memory_space<vmem>>, vector<1x32xf32>
    %cst_9 = arith.constant dense<0.000000e+00> : vector<16xf32>
    %11 = vector.multi_reduction <add>, %8, %cst_9 [1] : vector<16x32xf32> to vector<16xf32>
    %12 = vector.shape_cast %11 : vector<16xf32> to vector<16x1xf32>
    %cst_10 = arith.constant 3.200000e+01 : f32
    %13 = vector.broadcast %cst_10 : f32 to vector<16x1xf32>
    %14 = arith.divf %12, %13 : vector<16x1xf32>
    %15 = vector.broadcast %14 : vector<16x1xf32> to vector<16x32xf32>
    %16 = arith.subf %8, %15 : vector<16x32xf32>
    %17 = arith.mulf %16, %16 : vector<16x32xf32>
    %cst_11 = arith.constant dense<0.000000e+00> : vector<16xf32>
    %18 = vector.multi_reduction <add>, %17, %cst_11 [1] : vector<16x32xf32> to vector<16xf32>
    %19 = vector.shape_cast %18 : vector<16xf32> to vector<16x1xf32>
    %cst_12 = arith.constant 3.200000e+01 : f32
    %20 = vector.broadcast %cst_12 : f32 to vector<16x1xf32>
    %21 = arith.divf %19, %20 : vector<16x1xf32>
    %22 = vector.broadcast %14 : vector<16x1xf32> to vector<16x32xf32>
    %23 = arith.subf %8, %22 : vector<16x32xf32>
    %cst_13 = arith.constant 9.99999974E-6 : f32
    %24 = vector.broadcast %cst_13 : f32 to vector<16x1xf32>
    %25 = arith.addf %21, %24 : vector<16x1xf32>
    %26 = math.rsqrt %25 : vector<16x1xf32>
    %27 = vector.broadcast %26 : vector<16x1xf32> to vector<16x32xf32>
    %28 = arith.mulf %23, %27 : vector<16x32xf32>
    %29 = vector.broadcast %9 : vector<1x32xf32> to vector<16x32xf32>
    %30 = arith.mulf %28, %29 : vector<16x32xf32>
    %31 = vector.broadcast %10 : vector<1x32xf32> to vector<16x32xf32>
    %32 = arith.addf %30, %31 : vector<16x32xf32>
    %c0_14 = arith.constant 0 : index
    %c0_15 = arith.constant 0 : index
    %33 = vector.load %arg7[%c0_14, %c0_15] : memref<208x64xf32, #tpu.memory_space<vmem>>, vector<32x64xf32>
    %c32_16 = arith.constant 32 : index
    %c0_17 = arith.constant 0 : index
    %34 = vector.load %arg7[%c32_16, %c0_17] : memref<208x64xf32, #tpu.memory_space<vmem>>, vector<16x64xf32>
    %c48 = arith.constant 48 : index
    %c0_18 = arith.constant 0 : index
    %35 = vector.load %arg7[%c48, %c0_18] : memref<208x64xf32, #tpu.memory_space<vmem>>, vector<64x32xf32>
    %c112 = arith.constant 112 : index
    %c0_19 = arith.constant 0 : index
    %36 = vector.load %arg7[%c112, %c0_19] : memref<208x64xf32, #tpu.memory_space<vmem>>, vector<16x16xf32>
    %37 = arith.truncf %32 : vector<16x32xf32> to vector<16x32xbf16>
    %c0_20 = arith.constant 0 : index
    %c0_21 = arith.constant 0 : index
    %c0_22 = arith.constant 0 : index
    %c0_23 = arith.constant 0 : index
    %38 = vector.load %arg2[%c0_20, %c0_21, %c0_22, %c0_23] : memref<2x3x32x32xbf16, #tpu.memory_space<vmem>>, vector<1x1x32x32xbf16>
    %39 = vector.shape_cast %38 : vector<1x1x32x32xbf16> to vector<32x32xbf16>
    %cst_24 = arith.constant dense<0.000000e+00> : vector<16x32xf32>
    %40 = tpu.matmul %37, %39, %cst_24 {dimension_numbers = #tpu.dot_dimension_numbers<[1], [0], [0], [1], [0, 0, 1, 1], [], []>} : vector<16x32xbf16>, vector<32x32xbf16>, vector<16x32xf32> -> vector<16x32xf32>
    %c0_25 = arith.constant 0 : index
    %c1_26 = arith.constant 1 : index
    %c0_27 = arith.constant 0 : index
    %c0_28 = arith.constant 0 : index
    %41 = vector.load %arg2[%c0_25, %c1_26, %c0_27, %c0_28] : memref<2x3x32x32xbf16, #tpu.memory_space<vmem>>, vector<1x1x32x32xbf16>
    %42 = vector.shape_cast %41 : vector<1x1x32x32xbf16> to vector<32x32xbf16>
    %cst_29 = arith.constant dense<0.000000e+00> : vector<16x32xf32>
    %43 = tpu.matmul %37, %42, %cst_29 {dimension_numbers = #tpu.dot_dimension_numbers<[1], [0], [0], [1], [0, 0, 1, 1], [], []>} : vector<16x32xbf16>, vector<32x32xbf16>, vector<16x32xf32> -> vector<16x32xf32>
    %c0_30 = arith.constant 0 : index
    %c2 = arith.constant 2 : index
    %c0_31 = arith.constant 0 : index
    %c0_32 = arith.constant 0 : index
    %44 = vector.load %arg2[%c0_30, %c2, %c0_31, %c0_32] : memref<2x3x32x32xbf16, #tpu.memory_space<vmem>>, vector<1x1x32x32xbf16>
    %45 = vector.shape_cast %44 : vector<1x1x32x32xbf16> to vector<32x32xbf16>
    %cst_33 = arith.constant dense<0.000000e+00> : vector<16x32xf32>
    %46 = tpu.matmul %37, %45, %cst_33 {dimension_numbers = #tpu.dot_dimension_numbers<[1], [0], [0], [1], [0, 0, 1, 1], [], []>} : vector<16x32xbf16>, vector<32x32xbf16>, vector<16x32xf32> -> vector<16x32xf32>
    %47 = vector.broadcast %4 : vector<16x1xf32> to vector<16x32xf32>
    %48 = arith.mulf %46, %47 : vector<16x32xf32>
    %49 = vector.broadcast %2 : vector<16x1xf32> to vector<16x32xf32>
    %50 = arith.mulf %46, %49 : vector<16x32xf32>
    %51 = tpu.concatenate %48, %48 in 1 : vector<16x32xf32>, vector<16x32xf32> -> vector<16x64xf32>
    %52 = arith.mulf %51, %34 : vector<16x64xf32>
    %cst_34 = arith.constant dense<0.000000e+00> : vector<32x64xf32>
    %53 = tpu.matmul %43, %52, %cst_34 {dimension_numbers = #tpu.dot_dimension_numbers<[0], [0], [1], [1], [0, 1, 1, 1], [], []>} : vector<16x32xf32>, vector<16x64xf32>, vector<32x64xf32> -> vector<32x64xf32>
    %54 = arith.mulf %53, %33 : vector<32x64xf32>
    %cst_35 = arith.constant dense<0.000000e+00> : vector<16x64xf32>
    %55 = tpu.matmul %40, %54, %cst_35 {dimension_numbers = #tpu.dot_dimension_numbers<[1], [0], [0], [1], [0, 0, 1, 1], [], []>} : vector<16x32xf32>, vector<32x64xf32>, vector<16x64xf32> -> vector<16x64xf32>
    %56 = arith.mulf %55, %34 : vector<16x64xf32>
    %cst_36 = arith.constant dense<0.000000e+00> : vector<16x32xf32>
    %57 = tpu.matmul %56, %35, %cst_36 {dimension_numbers = #tpu.dot_dimension_numbers<[1], [0], [0], [1], [0, 0, 1, 1], [], []>} : vector<16x64xf32>, vector<64x32xf32>, vector<16x32xf32> -> vector<16x32xf32>
    %cst_37 = arith.constant dense<0.000000e+00> : vector<16x32xf32>
    %58 = tpu.matmul %36, %50, %cst_37 {dimension_numbers = #tpu.dot_dimension_numbers<[1], [0], [0], [1], [0, 0, 1, 1], [], []>} : vector<16x16xf32>, vector<16x32xf32>, vector<16x32xf32> -> vector<16x32xf32>
    %cst_38 = arith.constant -1.000000e+09 : f32
    %59 = vector.broadcast %cst_38 : f32 to vector<16x32xf32>
    %60 = arith.mulf %58, %59 : vector<16x32xf32>
    %cst_39 = arith.constant 5.000000e-01 : f32
    %61 = vector.broadcast %cst_39 : f32 to vector<16x32xf32>
    %62 = arith.mulf %61, %57 : vector<16x32xf32>
    %63 = arith.addf %62, %60 : vector<16x32xf32>
    %c0_40 = arith.constant 0 : index
    %c0_41 = arith.constant 0 : index
    %c0_42 = arith.constant 0 : index
    %64 = vector.load %arg3[%c0_40, %c0_41, %c0_42] : memref<2x32x32xf32, #tpu.memory_space<vmem>>, vector<1x32x32xf32>
    %65 = vector.shape_cast %64 : vector<1x32x32xf32> to vector<32x32xf32>
    %cst_43 = arith.constant dense<0.000000e+00> : vector<16x32xf32>
    %66 = tpu.matmul %63, %65, %cst_43 {dimension_numbers = #tpu.dot_dimension_numbers<[1], [0], [0], [1], [0, 0, 1, 1], [], []>} : vector<16x32xf32>, vector<32x32xf32>, vector<16x32xf32> -> vector<16x32xf32>
    %c2_44 = arith.constant 2 : index
    %c0_45 = arith.constant 0 : index
    %67 = vector.load %arg6[%c2_44, %c0_45] : memref<16x64xf32, #tpu.memory_space<vmem>>, vector<1x32xf32>
    %68 = vector.broadcast %67 : vector<1x32xf32> to vector<16x32xf32>
    %69 = arith.addf %66, %68 : vector<16x32xf32>
    %70 = arith.addf %32, %69 : vector<16x32xf32>
    %c3 = arith.constant 3 : index
    %c0_46 = arith.constant 0 : index
    %71 = vector.load %arg6[%c3, %c0_46] : memref<16x64xf32, #tpu.memory_space<vmem>>, vector<1x32xf32>
    %c4 = arith.constant 4 : index
    %c0_47 = arith.constant 0 : index
    %72 = vector.load %arg6[%c4, %c0_47] : memref<16x64xf32, #tpu.memory_space<vmem>>, vector<1x32xf32>
    %cst_48 = arith.constant dense<0.000000e+00> : vector<16xf32>
    %73 = vector.multi_reduction <add>, %70, %cst_48 [1] : vector<16x32xf32> to vector<16xf32>
    %74 = vector.shape_cast %73 : vector<16xf32> to vector<16x1xf32>
    %cst_49 = arith.constant 3.200000e+01 : f32
    %75 = vector.broadcast %cst_49 : f32 to vector<16x1xf32>
    %76 = arith.divf %74, %75 : vector<16x1xf32>
    %77 = vector.broadcast %76 : vector<16x1xf32> to vector<16x32xf32>
    %78 = arith.subf %70, %77 : vector<16x32xf32>
    %79 = arith.mulf %78, %78 : vector<16x32xf32>
    %cst_50 = arith.constant dense<0.000000e+00> : vector<16xf32>
    %80 = vector.multi_reduction <add>, %79, %cst_50 [1] : vector<16x32xf32> to vector<16xf32>
    %81 = vector.shape_cast %80 : vector<16xf32> to vector<16x1xf32>
    %cst_51 = arith.constant 3.200000e+01 : f32
    %82 = vector.broadcast %cst_51 : f32 to vector<16x1xf32>
    %83 = arith.divf %81, %82 : vector<16x1xf32>
    %84 = vector.broadcast %76 : vector<16x1xf32> to vector<16x32xf32>
    %85 = arith.subf %70, %84 : vector<16x32xf32>
    %cst_52 = arith.constant 9.99999974E-6 : f32
    %86 = vector.broadcast %cst_52 : f32 to vector<16x1xf32>
    %87 = arith.addf %83, %86 : vector<16x1xf32>
    %88 = math.rsqrt %87 : vector<16x1xf32>
    %89 = vector.broadcast %88 : vector<16x1xf32> to vector<16x32xf32>
    %90 = arith.mulf %85, %89 : vector<16x32xf32>
    %91 = vector.broadcast %71 : vector<1x32xf32> to vector<16x32xf32>
    %92 = arith.mulf %90, %91 : vector<16x32xf32>
    %93 = vector.broadcast %72 : vector<1x32xf32> to vector<16x32xf32>
    %94 = arith.addf %92, %93 : vector<16x32xf32>
    %95 = arith.truncf %94 : vector<16x32xf32> to vector<16x32xbf16>
    %c0_53 = arith.constant 0 : index
    %c0_54 = arith.constant 0 : index
    %c0_55 = arith.constant 0 : index
    %96 = vector.load %arg4[%c0_53, %c0_54, %c0_55] : memref<2x32x64xbf16, #tpu.memory_space<vmem>>, vector<1x32x64xbf16>
    %97 = vector.shape_cast %96 : vector<1x32x64xbf16> to vector<32x64xbf16>
    %cst_56 = arith.constant dense<0.000000e+00> : vector<16x64xf32>
    %98 = tpu.matmul %95, %97, %cst_56 {dimension_numbers = #tpu.dot_dimension_numbers<[1], [0], [0], [1], [0, 0, 1, 1], [], []>} : vector<16x32xbf16>, vector<32x64xbf16>, vector<16x64xf32> -> vector<16x64xf32>
    %c5 = arith.constant 5 : index
    %c0_57 = arith.constant 0 : index
    %99 = vector.load %arg6[%c5, %c0_57] : memref<16x64xf32, #tpu.memory_space<vmem>>, vector<1x64xf32>
    %100 = vector.broadcast %99 : vector<1x64xf32> to vector<16x64xf32>
    %101 = arith.addf %98, %100 : vector<16x64xf32>
    %cst_58 = arith.constant 5.000000e-01 : f32
    %102 = vector.broadcast %cst_58 : f32 to vector<16x64xf32>
    %103 = arith.mulf %102, %101 : vector<16x64xf32>
    %cst_59 = arith.constant 0.707106769 : f32
    %104 = vector.broadcast %cst_59 : f32 to vector<16x64xf32>
    %105 = arith.mulf %101, %104 : vector<16x64xf32>
    %106 = math.erf %105 : vector<16x64xf32>
    %cst_60 = arith.constant 1.000000e+00 : f32
    %107 = vector.broadcast %cst_60 : f32 to vector<16x64xf32>
    %108 = arith.addf %107, %106 : vector<16x64xf32>
    %109 = arith.mulf %103, %108 : vector<16x64xf32>
    %110 = arith.truncf %109 : vector<16x64xf32> to vector<16x64xbf16>
    %c0_61 = arith.constant 0 : index
    %c0_62 = arith.constant 0 : index
    %c0_63 = arith.constant 0 : index
    %111 = vector.load %arg5[%c0_61, %c0_62, %c0_63] : memref<2x64x32xbf16, #tpu.memory_space<vmem>>, vector<1x64x32xbf16>
    %112 = vector.shape_cast %111 : vector<1x64x32xbf16> to vector<64x32xbf16>
    %cst_64 = arith.constant dense<0.000000e+00> : vector<16x32xf32>
    %113 = tpu.matmul %110, %112, %cst_64 {dimension_numbers = #tpu.dot_dimension_numbers<[1], [0], [0], [1], [0, 0, 1, 1], [], []>} : vector<16x64xbf16>, vector<64x32xbf16>, vector<16x32xf32> -> vector<16x32xf32>
    %c6 = arith.constant 6 : index
    %c0_65 = arith.constant 0 : index
    %114 = vector.load %arg6[%c6, %c0_65] : memref<16x64xf32, #tpu.memory_space<vmem>>, vector<1x32xf32>
    %115 = vector.broadcast %114 : vector<1x32xf32> to vector<16x32xf32>
    %116 = arith.addf %113, %115 : vector<16x32xf32>
    %117 = arith.truncf %116 : vector<16x32xf32> to vector<16x32xbf16>
    %c1_66 = arith.constant 1 : index
    %c0_67 = arith.constant 0 : index
    %c0_68 = arith.constant 0 : index
    %c0_69 = arith.constant 0 : index
    %118 = vector.load %arg2[%c1_66, %c0_67, %c0_68, %c0_69] : memref<2x3x32x32xbf16, #tpu.memory_space<vmem>>, vector<1x1x32x32xbf16>
    %119 = vector.shape_cast %118 : vector<1x1x32x32xbf16> to vector<32x32xbf16>
    %cst_70 = arith.constant dense<0.000000e+00> : vector<16x32xf32>
    %120 = tpu.matmul %117, %119, %cst_70 {dimension_numbers = #tpu.dot_dimension_numbers<[1], [0], [0], [1], [0, 0, 1, 1], [], []>} : vector<16x32xbf16>, vector<32x32xbf16>, vector<16x32xf32> -> vector<16x32xf32>
    %c1_71 = arith.constant 1 : index
    %c1_72 = arith.constant 1 : index
    %c0_73 = arith.constant 0 : index
    %c0_74 = arith.constant 0 : index
    %121 = vector.load %arg2[%c1_71, %c1_72, %c0_73, %c0_74] : memref<2x3x32x32xbf16, #tpu.memory_space<vmem>>, vector<1x1x32x32xbf16>
    %122 = vector.shape_cast %121 : vector<1x1x32x32xbf16> to vector<32x32xbf16>
    %cst_75 = arith.constant dense<0.000000e+00> : vector<16x32xf32>
    %123 = tpu.matmul %117, %122, %cst_75 {dimension_numbers = #tpu.dot_dimension_numbers<[1], [0], [0], [1], [0, 0, 1, 1], [], []>} : vector<16x32xbf16>, vector<32x32xbf16>, vector<16x32xf32> -> vector<16x32xf32>
    %c1_76 = arith.constant 1 : index
    %c2_77 = arith.constant 2 : index
    %c0_78 = arith.constant 0 : index
    %c0_79 = arith.constant 0 : index
    %124 = vector.load %arg2[%c1_76, %c2_77, %c0_78, %c0_79] : memref<2x3x32x32xbf16, #tpu.memory_space<vmem>>, vector<1x1x32x32xbf16>
    %125 = vector.shape_cast %124 : vector<1x1x32x32xbf16> to vector<32x32xbf16>
    %cst_80 = arith.constant dense<0.000000e+00> : vector<16x32xf32>
    %126 = tpu.matmul %117, %125, %cst_80 {dimension_numbers = #tpu.dot_dimension_numbers<[1], [0], [0], [1], [0, 0, 1, 1], [], []>} : vector<16x32xbf16>, vector<32x32xbf16>, vector<16x32xf32> -> vector<16x32xf32>
    %127 = vector.broadcast %4 : vector<16x1xf32> to vector<16x32xf32>
    %128 = arith.mulf %126, %127 : vector<16x32xf32>
    %129 = vector.broadcast %2 : vector<16x1xf32> to vector<16x32xf32>
    %130 = arith.mulf %126, %129 : vector<16x32xf32>
    %131 = tpu.concatenate %128, %128 in 1 : vector<16x32xf32>, vector<16x32xf32> -> vector<16x64xf32>
    %132 = arith.mulf %131, %34 : vector<16x64xf32>
    %cst_81 = arith.constant dense<0.000000e+00> : vector<32x64xf32>
    %133 = tpu.matmul %123, %132, %cst_81 {dimension_numbers = #tpu.dot_dimension_numbers<[0], [0], [1], [1], [0, 1, 1, 1], [], []>} : vector<16x32xf32>, vector<16x64xf32>, vector<32x64xf32> -> vector<32x64xf32>
    %134 = arith.mulf %133, %33 : vector<32x64xf32>
    %cst_82 = arith.constant dense<0.000000e+00> : vector<16x64xf32>
    %135 = tpu.matmul %120, %134, %cst_82 {dimension_numbers = #tpu.dot_dimension_numbers<[1], [0], [0], [1], [0, 0, 1, 1], [], []>} : vector<16x32xf32>, vector<32x64xf32>, vector<16x64xf32> -> vector<16x64xf32>
    %136 = arith.mulf %135, %34 : vector<16x64xf32>
    %cst_83 = arith.constant dense<0.000000e+00> : vector<16x32xf32>
    %137 = tpu.matmul %136, %35, %cst_83 {dimension_numbers = #tpu.dot_dimension_numbers<[1], [0], [0], [1], [0, 0, 1, 1], [], []>} : vector<16x64xf32>, vector<64x32xf32>, vector<16x32xf32> -> vector<16x32xf32>
    %cst_84 = arith.constant dense<0.000000e+00> : vector<16x32xf32>
    %138 = tpu.matmul %36, %130, %cst_84 {dimension_numbers = #tpu.dot_dimension_numbers<[1], [0], [0], [1], [0, 0, 1, 1], [], []>} : vector<16x16xf32>, vector<16x32xf32>, vector<16x32xf32> -> vector<16x32xf32>
    %cst_85 = arith.constant -1.000000e+09 : f32
    %139 = vector.broadcast %cst_85 : f32 to vector<16x32xf32>
    %140 = arith.mulf %138, %139 : vector<16x32xf32>
    %cst_86 = arith.constant 5.000000e-01 : f32
    %141 = vector.broadcast %cst_86 : f32 to vector<16x32xf32>
    %142 = arith.mulf %141, %137 : vector<16x32xf32>
    %143 = arith.addf %142, %140 : vector<16x32xf32>
    %c1_87 = arith.constant 1 : index
    %c0_88 = arith.constant 0 : index
    %c0_89 = arith.constant 0 : index
    %144 = vector.load %arg3[%c1_87, %c0_88, %c0_89] : memref<2x32x32xf32, #tpu.memory_space<vmem>>, vector<1x32x32xf32>
    %145 = vector.shape_cast %144 : vector<1x32x32xf32> to vector<32x32xf32>
    %cst_90 = arith.constant dense<0.000000e+00> : vector<16x32xf32>
    %146 = tpu.matmul %143, %145, %cst_90 {dimension_numbers = #tpu.dot_dimension_numbers<[1], [0], [0], [1], [0, 0, 1, 1], [], []>} : vector<16x32xf32>, vector<32x32xf32>, vector<16x32xf32> -> vector<16x32xf32>
    %c7 = arith.constant 7 : index
    %c0_91 = arith.constant 0 : index
    %147 = vector.load %arg6[%c7, %c0_91] : memref<16x64xf32, #tpu.memory_space<vmem>>, vector<1x32xf32>
    %148 = vector.broadcast %147 : vector<1x32xf32> to vector<16x32xf32>
    %149 = arith.addf %146, %148 : vector<16x32xf32>
    %150 = arith.addf %116, %149 : vector<16x32xf32>
    %c8 = arith.constant 8 : index
    %c0_92 = arith.constant 0 : index
    %151 = vector.load %arg6[%c8, %c0_92] : memref<16x64xf32, #tpu.memory_space<vmem>>, vector<1x32xf32>
    %c9 = arith.constant 9 : index
    %c0_93 = arith.constant 0 : index
    %152 = vector.load %arg6[%c9, %c0_93] : memref<16x64xf32, #tpu.memory_space<vmem>>, vector<1x32xf32>
    %cst_94 = arith.constant dense<0.000000e+00> : vector<16xf32>
    %153 = vector.multi_reduction <add>, %150, %cst_94 [1] : vector<16x32xf32> to vector<16xf32>
    %154 = vector.shape_cast %153 : vector<16xf32> to vector<16x1xf32>
    %cst_95 = arith.constant 3.200000e+01 : f32
    %155 = vector.broadcast %cst_95 : f32 to vector<16x1xf32>
    %156 = arith.divf %154, %155 : vector<16x1xf32>
    %157 = vector.broadcast %156 : vector<16x1xf32> to vector<16x32xf32>
    %158 = arith.subf %150, %157 : vector<16x32xf32>
    %159 = arith.mulf %158, %158 : vector<16x32xf32>
    %cst_96 = arith.constant dense<0.000000e+00> : vector<16xf32>
    %160 = vector.multi_reduction <add>, %159, %cst_96 [1] : vector<16x32xf32> to vector<16xf32>
    %161 = vector.shape_cast %160 : vector<16xf32> to vector<16x1xf32>
    %cst_97 = arith.constant 3.200000e+01 : f32
    %162 = vector.broadcast %cst_97 : f32 to vector<16x1xf32>
    %163 = arith.divf %161, %162 : vector<16x1xf32>
    %164 = vector.broadcast %156 : vector<16x1xf32> to vector<16x32xf32>
    %165 = arith.subf %150, %164 : vector<16x32xf32>
    %cst_98 = arith.constant 9.99999974E-6 : f32
    %166 = vector.broadcast %cst_98 : f32 to vector<16x1xf32>
    %167 = arith.addf %163, %166 : vector<16x1xf32>
    %168 = math.rsqrt %167 : vector<16x1xf32>
    %169 = vector.broadcast %168 : vector<16x1xf32> to vector<16x32xf32>
    %170 = arith.mulf %165, %169 : vector<16x32xf32>
    %171 = vector.broadcast %151 : vector<1x32xf32> to vector<16x32xf32>
    %172 = arith.mulf %170, %171 : vector<16x32xf32>
    %173 = vector.broadcast %152 : vector<1x32xf32> to vector<16x32xf32>
    %174 = arith.addf %172, %173 : vector<16x32xf32>
    %175 = arith.truncf %174 : vector<16x32xf32> to vector<16x32xbf16>
    %c1_99 = arith.constant 1 : index
    %c0_100 = arith.constant 0 : index
    %c0_101 = arith.constant 0 : index
    %176 = vector.load %arg4[%c1_99, %c0_100, %c0_101] : memref<2x32x64xbf16, #tpu.memory_space<vmem>>, vector<1x32x64xbf16>
    %177 = vector.shape_cast %176 : vector<1x32x64xbf16> to vector<32x64xbf16>
    %cst_102 = arith.constant dense<0.000000e+00> : vector<16x64xf32>
    %178 = tpu.matmul %175, %177, %cst_102 {dimension_numbers = #tpu.dot_dimension_numbers<[1], [0], [0], [1], [0, 0, 1, 1], [], []>} : vector<16x32xbf16>, vector<32x64xbf16>, vector<16x64xf32> -> vector<16x64xf32>
    %c10 = arith.constant 10 : index
    %c0_103 = arith.constant 0 : index
    %179 = vector.load %arg6[%c10, %c0_103] : memref<16x64xf32, #tpu.memory_space<vmem>>, vector<1x64xf32>
    %180 = vector.broadcast %179 : vector<1x64xf32> to vector<16x64xf32>
    %181 = arith.addf %178, %180 : vector<16x64xf32>
    %cst_104 = arith.constant 5.000000e-01 : f32
    %182 = vector.broadcast %cst_104 : f32 to vector<16x64xf32>
    %183 = arith.mulf %182, %181 : vector<16x64xf32>
    %cst_105 = arith.constant 0.707106769 : f32
    %184 = vector.broadcast %cst_105 : f32 to vector<16x64xf32>
    %185 = arith.mulf %181, %184 : vector<16x64xf32>
    %186 = math.erf %185 : vector<16x64xf32>
    %cst_106 = arith.constant 1.000000e+00 : f32
    %187 = vector.broadcast %cst_106 : f32 to vector<16x64xf32>
    %188 = arith.addf %187, %186 : vector<16x64xf32>
    %189 = arith.mulf %183, %188 : vector<16x64xf32>
    %190 = arith.truncf %189 : vector<16x64xf32> to vector<16x64xbf16>
    %c1_107 = arith.constant 1 : index
    %c0_108 = arith.constant 0 : index
    %c0_109 = arith.constant 0 : index
    %191 = vector.load %arg5[%c1_107, %c0_108, %c0_109] : memref<2x64x32xbf16, #tpu.memory_space<vmem>>, vector<1x64x32xbf16>
    %192 = vector.shape_cast %191 : vector<1x64x32xbf16> to vector<64x32xbf16>
    %cst_110 = arith.constant dense<0.000000e+00> : vector<16x32xf32>
    %193 = tpu.matmul %190, %192, %cst_110 {dimension_numbers = #tpu.dot_dimension_numbers<[1], [0], [0], [1], [0, 0, 1, 1], [], []>} : vector<16x64xbf16>, vector<64x32xbf16>, vector<16x32xf32> -> vector<16x32xf32>
    %c11 = arith.constant 11 : index
    %c0_111 = arith.constant 0 : index
    %194 = vector.load %arg6[%c11, %c0_111] : memref<16x64xf32, #tpu.memory_space<vmem>>, vector<1x32xf32>
    %195 = vector.broadcast %194 : vector<1x32xf32> to vector<16x32xf32>
    %196 = arith.addf %193, %195 : vector<16x32xf32>
    %197 = arith.truncf %196 : vector<16x32xf32> to vector<16x32xbf16>
    %c128 = arith.constant 128 : index
    %c0_112 = arith.constant 0 : index
    %198 = vector.load %arg7[%c128, %c0_112] : memref<208x64xf32, #tpu.memory_space<vmem>>, vector<32x24xf32>
    %199 = arith.truncf %198 : vector<32x24xf32> to vector<32x24xbf16>
    %cst_113 = arith.constant dense<0.000000e+00> : vector<16x24xf32>
    %200 = tpu.matmul %197, %199, %cst_113 {dimension_numbers = #tpu.dot_dimension_numbers<[1], [0], [0], [1], [0, 0, 1, 1], [], []>} : vector<16x32xbf16>, vector<32x24xbf16>, vector<16x24xf32> -> vector<16x24xf32>
    %c176 = arith.constant 176 : index
    %c0_114 = arith.constant 0 : index
    %201 = vector.load %arg7[%c176, %c0_114] : memref<208x64xf32, #tpu.memory_space<vmem>>, vector<2x16xf32>
    %c160 = arith.constant 160 : index
    %c0_115 = arith.constant 0 : index
    %202 = vector.load %arg7[%c160, %c0_115] : memref<208x64xf32, #tpu.memory_space<vmem>>, vector<16x24xf32>
    %203 = arith.mulf %200, %202 : vector<16x24xf32>
    %cst_116 = arith.constant dense<0.000000e+00> : vector<2x24xf32>
    %204 = tpu.matmul %201, %203, %cst_116 {dimension_numbers = #tpu.dot_dimension_numbers<[1], [0], [0], [1], [0, 0, 1, 1], [], []>} : vector<2x16xf32>, vector<16x24xf32>, vector<2x24xf32> -> vector<2x24xf32>
    %c184 = arith.constant 184 : index
    %c0_117 = arith.constant 0 : index
    %205 = vector.load %arg7[%c184, %c0_117] : memref<208x64xf32, #tpu.memory_space<vmem>>, vector<24x3xf32>
    %cst_118 = arith.constant dense<0.000000e+00> : vector<2x3xf32>
    %206 = tpu.matmul %204, %205, %cst_118 {dimension_numbers = #tpu.dot_dimension_numbers<[1], [0], [0], [1], [0, 0, 1, 1], [], []>} : vector<2x24xf32>, vector<24x3xf32>, vector<2x3xf32> -> vector<2x3xf32>
    %c12 = arith.constant 12 : index
    %c0_119 = arith.constant 0 : index
    %207 = vector.load %arg6[%c12, %c0_119] : memref<16x64xf32, #tpu.memory_space<vmem>>, vector<1x3xf32>
    %208 = vector.broadcast %207 : vector<1x3xf32> to vector<2x3xf32>
    %209 = arith.addf %206, %208 : vector<2x3xf32>
    %210 = math.tanh %209 : vector<2x3xf32>
    %c0_120 = arith.constant 0 : index
    %c0_121 = arith.constant 0 : index
    %211 = vector.load %arg8[%c0_120, %c0_121] : memref<2x3xf32, #tpu.memory_space<vmem>>, vector<2x3xf32>
    tpu.vector_store %arg8[%c0_120, %c0_121], %210 {strides = array<i32>} : memref<2x3xf32, #tpu.memory_space<vmem>>, vector<2x3xf32>,
    return
  }
}

</mosaic_0001>

<llo_original>
// kernel: tpu_custom_call.1
$region0: #{tpu_custom_call.1}
  #allocation0 [shape = 'u32[]', space=smem, size = 0x4, offset = 0x4, fixed_abs, tag = 'smem constant byte address 0x4 - core index']
  #allocation1 [shape = 'u32[144,128]{1,0:T(1,128)}', space=vmem, size = 0x12000, scoped, tag = 'internal scratch']
  %s0 = inlined_call_operand.vmem [shape: f32[48,32], index: 0, kind: input, shape index: {}]
  %s1 = inlined_call_operand.vmem [shape: bf16[16,32], index: 1, kind: input, shape index: {}]
  %s2 = inlined_call_operand.vmem [shape: bf16[2,3,32,32], index: 2, kind: input, shape index: {}]
  %s3 = inlined_call_operand.vmem [shape: f32[2,32,32], index: 3, kind: input, shape index: {}]
  %s4 = inlined_call_operand.vmem [shape: bf16[2,32,64], index: 4, kind: input, shape index: {}]
  %s5 = inlined_call_operand.vmem [shape: bf16[2,64,32], index: 5, kind: input, shape index: {}]
  %s6 = inlined_call_operand.vmem [shape: f32[16,64], index: 6, kind: input, shape index: {}]
  %s7 = inlined_call_operand.vmem [shape: f32[208,64], index: 7, kind: input, shape index: {}]
  %s8 = inlined_call_operand.hbm [shape: f32[2,3], index: 8, kind: output, shape index: {}]
  %s9 = sld [smem:[#allocation0]]
  $region42: #{tpu_custom_call.1} parent=0
    _
  %s11 = ssub.s32 1, %s9
  %s12 = scalar_select 0, %s11, %s9
  $region1: #{tpu_custom_call.1} parent=0
    #allocation2 [shape = 'u8[1024]{0}', space=vmem, size = 0x400, scoped, tag = 'output window, operand 0, single buffered']
    #allocation3 [shape = 's32[1]{0}', space=sflag, size = 0x4, scoped, tag = 'scoped memory for tpu_custom_call.1']
    %13 = vsyncpa [#allocation3], 0
    // Predicated region
    $region2: #{tpu_custom_call.1} parent=1 // pred_check
      _
    $region3: #{tpu_custom_call.1} parent=1 // pred_check_branch
      %15 = sbr.rel (0) target = $region5
    $region4: #{tpu_custom_call.1} parent=1 // pred_region
      _
    $region5: #{tpu_custom_call.1} parent=1 // pred_fallthru
      _
    // Predicated region
    $region6: #{tpu_custom_call.1} parent=1 // pred_check
      _
    $region7: #{tpu_custom_call.1} parent=1 // pred_check_branch
      %17 = sbr.rel (0) target = $region9
    $region8: #{tpu_custom_call.1} parent=1 // pred_region
      _
    $region9: #{tpu_custom_call.1} parent=1 // pred_fallthru
      _
    // Predicated region
    $region10: #{tpu_custom_call.1} parent=1 // pred_check
      _
    $region11: #{tpu_custom_call.1} parent=1 // pred_check_branch
      %19 = sbr.rel (0) target = $region13
    $region12: #{tpu_custom_call.1} parent=1 // pred_region
      _
    $region13: #{tpu_custom_call.1} parent=1 // pred_fallthru
      _
    // Predicated region
    $region14: #{tpu_custom_call.1} parent=1 // pred_check
      _
    $region15: #{tpu_custom_call.1} parent=1 // pred_check_branch
      %21 = sbr.rel (0) target = $region17
    $region16: #{tpu_custom_call.1} parent=1 // pred_region
      _
    $region17: #{tpu_custom_call.1} parent=1 // pred_fallthru
      _
    // Predicated region
    $region18: #{tpu_custom_call.1} parent=1 // pred_check
      _
    $region19: #{tpu_custom_call.1} parent=1 // pred_check_branch
      %23 = sbr.rel (0) target = $region21
    $region20: #{tpu_custom_call.1} parent=1 // pred_region
      _
    $region21: #{tpu_custom_call.1} parent=1 // pred_fallthru
      _
    // Predicated region
    $region22: #{tpu_custom_call.1} parent=1 // pred_check
      _
    $region23: #{tpu_custom_call.1} parent=1 // pred_check_branch
      %25 = sbr.rel (0) target = $region25
    $region24: #{tpu_custom_call.1} parent=1 // pred_region
      _
    $region25: #{tpu_custom_call.1} parent=1 // pred_fallthru
      _
    // Predicated region
    $region26: #{tpu_custom_call.1} parent=1 // pred_check
      _
    $region27: #{tpu_custom_call.1} parent=1 // pred_check_branch
      %27 = sbr.rel (0) target = $region29
    $region28: #{tpu_custom_call.1} parent=1 // pred_region
      _
    $region29: #{tpu_custom_call.1} parent=1 // pred_fallthru
      _
    // Predicated region
    $region30: #{tpu_custom_call.1} parent=1 // pred_check
      _
    $region31: #{tpu_custom_call.1} parent=1 // pred_check_branch
      %29 = sbr.rel (0) target = $region33
    $region32: #{tpu_custom_call.1} parent=1 // pred_region
      _
    $region33: #{tpu_custom_call.1} parent=1 // pred_fallthru
      _
    %v31 = vld [vmem:[%s0] sm:$0xff]
    %v32 = vld [vmem:[%s0 + $0x8] sm:$0xff]
    %v33 = vld [vmem:[%s0 + $0x10] sm:$0xff]
    %v34 = vld [vmem:[%s0 + $0x18] sm:$0xff]
    %v35 = vld [vmem:[%s0 + $0x20] sm:$0xff]
    %v36 = vld [vmem:[%s0 + $0x28] sm:$0xff]
    %v37 = vsub.f32 1.0, %v35
    %v38 = vsub.f32 1.0, %v36
    %v39 = vpack.c.bf16 %v32, %v31
    %v40 = vld [vmem:[%s1] sm:$0xf]
    %v41 = vld [vmem:[%s1 + $0x4] sm:$0xf]
    %v44 = vunpack.c.l.b16 %v40
    %v45 = vunpack.c.l.b16 %v41
    %v46 = vpack.c.b16 %v45, %v44
    %vm48 = vcmask 130048
    %v50 = vsel %vm48, %v39, 0
    %52 = vmatprep.subr.bf16.mxu0 0
    %53 = vmatpush1.bf16.msra.mxu0 0
    %54 = vmatprep.subr.bf16.mxu0 0
    %55 = vmatpush1.bf16.msra.mxu0 0
    %56 = vmatprep.subr.bf16.mxu0 0
    %57 = vmatpush1.bf16.msra.mxu0 0
    %58 = vmatprep.subr.bf16.mxu0 0
    %59 = vmatpush1.bf16.msra.mxu0 0
    %60 = vmatprep.subr.bf16.mxu0 0
    %61 = vmatpush1.bf16.msra.mxu0 0
    %62 = vmatprep.subr.bf16.mxu0 0
    %63 = vmatpush1.bf16.msra.mxu0 0
    %64 = vmatprep.subr.bf16.mxu0 0
    %65 = vmatpush1.bf16.msra.mxu0 0
    %66 = vmatprep.subr.bf16.mxu0 0
    %67 = vmatpush1.bf16.msra.mxu0 %v46
    %68 = vmatprep.subr.bf16.mxu0 0
    %69 = vmatpush2.bf16.msra.mxu0 0
    %70 = vmatprep.subr.bf16.mxu0 0
    %71 = vmatpush2.bf16.msra.mxu0 0
    %72 = vmatprep.subr.bf16.mxu0 0
    %73 = vmatpush2.bf16.msra.mxu0 0
    %74 = vmatprep.subr.bf16.mxu0 0
    %75 = vmatpush2.bf16.msra.mxu0 0
    %76 = vmatprep.subr.bf16.mxu0 0
    %77 = vmatpush2.bf16.msra.mxu0 0
    %78 = vmatprep.subr.bf16.mxu0 0
    %79 = vmatpush2.bf16.msra.mxu0 0
    %80 = vmatprep.subr.bf16.mxu0 0
    %81 = vmatpush2.bf16.msra.mxu0 0
    %82 = vmatprep.subr.bf16.mxu0 0
    %83 = vmatpush2.bf16.msra.mxu0 0
    %84 = vmatprep.mubr.bf16.mxu0 0
    %85 = vmatmul.mubr.bf16.gmra.mxu0 %v50
    %v86 = vpop.f32.mrf.mxu0
    %v87 = vadd.f32 %v33, %v86
    %v88 = vpop.f32.mrf.mxu0
    %v89 = vpop.f32.mrf.mxu0
    %v90 = vadd.f32 %v34, %v89
    %v91 = vpop.f32.mrf.mxu0
    %92 = vdwg.mxu0
    %v93 = vld [vmem:[%s6] sm:$0x1]
    %v94 = vld [vmem:[%s6 + $0x1] sm:$0x1]
    %vm95 = vcmask 261120
    %v96 = vsel %vm95, %v87, 0.0
    %97 = vadd.xlane.f32.xlu0 %v96
    %v98 = vpop.xlane.xlu0 %97
    %v99 = vsel %vm95, %v90, 0.0
    %100 = vadd.xlane.f32.xlu0 %v99
    %v101 = vpop.xlane.xlu0 %100
    %v102 = vrcp.pop 32.0
    %v103 = vmul.f32 %v98, %v102
    %v104 = vmul.f32 %v101, %v102
    %v105 = vsub.f32 %v87, %v103
    %v106 = vsub.f32 %v90, %v104
    %v107 = vmul.f32 %v105, %v105
    %v108 = vmul.f32 %v106, %v106
    %v109 = vsel %vm95, %v107, 0.0
    %110 = vadd.xlane.f32.xlu0 %v109
    %v111 = vpop.xlane.xlu0 %110
    %v112 = vsel %vm95, %v108, 0.0
    %113 = vadd.xlane.f32.xlu0 %v112
    %v114 = vpop.xlane.xlu0 %113
    %v115 = vmul.f32 %v111, %v102
    %v116 = vmul.f32 %v114, %v102
    %v117 = vadd.f32 %v115, 1e-05
    %v118 = vadd.f32 %v116, 1e-05
    %v119 = vrsqrt.pop %v117
    %v120 = vrsqrt.pop %v118
    %v121 = vmul.f32 %v105, %v119
    %v122 = vmul.f32 %v106, %v120
    %v123 = vlaneseq
    %v124 = vshrl.u32 %v123, 7
    %v125 = vsub.s32 0, %v124
    %v126 = vrot.slane %v93, %v125
    %v127 = vmul.f32 %v121, %v126
    %v128 = vmul.f32 %v122, %v126
    %v129 = vlaneseq
    %v130 = vshrl.u32 %v129, 7
    %v131 = vsub.s32 0, %v130
    %v132 = vrot.slane %v94, %v131
    %v133 = vadd.f32 %v127, %v132
    %v134 = vadd.f32 %v128, %v132
    %v135 = vld [vmem:[%s7] sm:$0xff]
    %v136 = vld [vmem:[%s7 + $0x8] sm:$0xff]
    %v137 = vld [vmem:[%s7 + $0x10] sm:$0xff]
    %v138 = vld [vmem:[%s7 + $0x18] sm:$0xff]
    %v139 = vld [vmem:[%s7 + $0x20] sm:$0xff]
    %v140 = vld [vmem:[%s7 + $0x28] sm:$0xff]
    %v141 = vld [vmem:[%s7 + $0x30] sm:$0xff]
    %v142 = vld [vmem:[%s7 + $0x38] sm:$0xff]
    %v143 = vld [vmem:[%s7 + $0x40] sm:$0xff]
    %v144 = vld [vmem:[%s7 + $0x48] sm:$0xff]
    %v145 = vld [vmem:[%s7 + $0x50] sm:$0xff]
    %v146 = vld [vmem:[%s7 + $0x58] sm:$0xff]
    %v147 = vld [vmem:[%s7 + $0x60] sm:$0xff]
    %v148 = vld [vmem:[%s7 + $0x68] sm:$0xff]
    %v149 = vld [vmem:[%s7 + $0x70] sm:$0xff]
    %v150 = vld [vmem:[%s7 + $0x78] sm:$0xff]
    %v151 = vpack.c.bf16 %v134, %v133
    %v152 = vld [vmem:[%s2] sm:$0xf]
    %v153 = vld [vmem:[%s2 + $0x4] sm:$0xf]
    %v154 = vld [vmem:[%s2 + $0x8] sm:$0xf]
    %v155 = vld [vmem:[%s2 + $0xc] sm:$0xf]
    %v160 = vunpack.c.l.b16 %v152
    %v161 = vunpack.c.l.b16 %v153
    %v162 = vunpack.c.l.b16 %v154
    %v163 = vunpack.c.l.b16 %v155
    %v164 = vpack.c.b16 %v161, %v160
    %v165 = vpack.c.b16 %v163, %v162
    %v169 = vsel %vm95, %v151, 0
    %171 = vmatprep.subr.bf16.mxu0 0
    %172 = vmatpush1.bf16.msra.mxu0 0
    %173 = vmatprep.subr.bf16.mxu0 0
    %174 = vmatpush1.bf16.msra.mxu0 0
    %175 = vmatprep.subr.bf16.mxu0 0
    %176 = vmatpush1.bf16.msra.mxu0 0
    %177 = vmatprep.subr.bf16.mxu0 0
    %178 = vmatpush1.bf16.msra.mxu0 0
    %179 = vmatprep.subr.bf16.mxu0 0
    %180 = vmatpush1.bf16.msra.mxu0 0
    %181 = vmatprep.subr.bf16.mxu0 0
    %182 = vmatpush1.bf16.msra.mxu0 0
    %183 = vmatprep.subr.bf16.mxu0 0
    %184 = vmatpush1.bf16.msra.mxu0 %v165
    %185 = vmatprep.subr.bf16.mxu0 0
    %186 = vmatpush1.bf16.msra.mxu0 %v164
    %187 = vmatprep.subr.bf16.mxu0 0
    %188 = vmatpush2.bf16.msra.mxu0 0
    %189 = vmatprep.subr.bf16.mxu0 0
    %190 = vmatpush2.bf16.msra.mxu0 0
    %191 = vmatprep.subr.bf16.mxu0 0
    %192 = vmatpush2.bf16.msra.mxu0 0
    %193 = vmatprep.subr.bf16.mxu0 0
    %194 = vmatpush2.bf16.msra.mxu0 0
    %195 = vmatprep.subr.bf16.mxu0 0
    %196 = vmatpush2.bf16.msra.mxu0 0
    %197 = vmatprep.subr.bf16.mxu0 0
    %198 = vmatpush2.bf16.msra.mxu0 0
    %199 = vmatprep.subr.bf16.mxu0 0
    %200 = vmatpush2.bf16.msra.mxu0 0
    %201 = vmatprep.subr.bf16.mxu0 0
    %202 = vmatpush2.bf16.msra.mxu0 0
    %203 = vmatprep.mubr.bf16.mxu0 0
    %204 = vmatmul.mubr.bf16.gmra.mxu0 %v169
    %v205 = vpop.f32.mrf.mxu0
    %v206 = vadd.f32 0.0, %v205
    %v207 = vpop.f32.mrf.mxu0
    %v208 = vpop.f32.mrf.mxu0
    %v209 = vadd.f32 0.0, %v208
    %v210 = vpop.f32.mrf.mxu0
    %211 = vdwg.mxu0
    %s212 = scalar_lea.vmem %s2, 16
    %v213 = vld [vmem:[%s212] sm:$0xf]
    %v214 = vld [vmem:[%s212 + $0x4] sm:$0xf]
    %v215 = vld [vmem:[%s212 + $0x8] sm:$0xf]
    %v216 = vld [vmem:[%s212 + $0xc] sm:$0xf]
    %v221 = vunpack.c.l.b16 %v213
    %v222 = vunpack.c.l.b16 %v214
    %v223 = vunpack.c.l.b16 %v215
    %v224 = vunpack.c.l.b16 %v216
    %v225 = vpack.c.b16 %v222, %v221
    %v226 = vpack.c.b16 %v224, %v223
    %229 = vmatprep.subr.bf16.mxu0 0
    %230 = vmatpush1.bf16.msra.mxu0 0
    %231 = vmatprep.subr.bf16.mxu0 0
    %232 = vmatpush1.bf16.msra.mxu0 0
    %233 = vmatprep.subr.bf16.mxu0 0
    %234 = vmatpush1.bf16.msra.mxu0 0
    %235 = vmatprep.subr.bf16.mxu0 0
    %236 = vmatpush1.bf16.msra.mxu0 0
    %237 = vmatprep.subr.bf16.mxu0 0
    %238 = vmatpush1.bf16.msra.mxu0 0
    %239 = vmatprep.subr.bf16.mxu0 0
    %240 = vmatpush1.bf16.msra.mxu0 0
    %241 = vmatprep.subr.bf16.mxu0 0
    %242 = vmatpush1.bf16.msra.mxu0 %v226
    %243 = vmatprep.subr.bf16.mxu0 0
    %244 = vmatpush1.bf16.msra.mxu0 %v225
    %245 = vmatprep.subr.bf16.mxu0 0
    %246 = vmatpush2.bf16.msra.mxu0 0
    %247 = vmatprep.subr.bf16.mxu0 0
    %248 = vmatpush2.bf16.msra.mxu0 0
    %249 = vmatprep.subr.bf16.mxu0 0
    %250 = vmatpush2.bf16.msra.mxu0 0
    %251 = vmatprep.subr.bf16.mxu0 0
    %252 = vmatpush2.bf16.msra.mxu0 0
    %253 = vmatprep.subr.bf16.mxu0 0
    %254 = vmatpush2.bf16.msra.mxu0 0
    %255 = vmatprep.subr.bf16.mxu0 0
    %256 = vmatpush2.bf16.msra.mxu0 0
    %257 = vmatprep.subr.bf16.mxu0 0
    %258 = vmatpush2.bf16.msra.mxu0 0
    %259 = vmatprep.subr.bf16.mxu0 0
    %260 = vmatpush2.bf16.msra.mxu0 0
    %261 = vmatprep.mubr.bf16.mxu0 0
    %262 = vmatmul.mubr.bf16.gmra.mxu0 %v169
    %v263 = vpop.f32.mrf.mxu0
    %v264 = vadd.f32 0.0, %v263
    %v265 = vpop.f32.mrf.mxu0
    %v266 = vpop.f32.mrf.mxu0
    %v267 = vadd.f32 0.0, %v266
    %v268 = vpop.f32.mrf.mxu0
    %269 = vdwg.mxu0
    %s270 = scalar_lea.vmem %s2, 32
    %v271 = vld [vmem:[%s270] sm:$0xf]
    %v272 = vld [vmem:[%s270 + $0x4] sm:$0xf]
    %v273 = vld [vmem:[%s270 + $0x8] sm:$0xf]
    %v274 = vld [vmem:[%s270 + $0xc] sm:$0xf]
    %v279 = vunpack.c.l.b16 %v271
    %v280 = vunpack.c.l.b16 %v272
    %v281 = vunpack.c.l.b16 %v273
    %v282 = vunpack.c.l.b16 %v274
    %v283 = vpack.c.b16 %v280, %v279
    %v284 = vpack.c.b16 %v282, %v281
    %287 = vmatprep.subr.bf16.mxu0 0
    %288 = vmatpush1.bf16.msra.mxu0 0
    %289 = vmatprep.subr.bf16.mxu0 0
    %290 = vmatpush1.bf16.msra.mxu0 0
    %291 = vmatprep.subr.bf16.mxu0 0
    %292 = vmatpush1.bf16.msra.mxu0 0
    %293 = vmatprep.subr.bf16.mxu0 0
    %294 = vmatpush1.bf16.msra.mxu0 0
    %295 = vmatprep.subr.bf16.mxu0 0
    %296 = vmatpush1.bf16.msra.mxu0 0
    %297 = vmatprep.subr.bf16.mxu0 0
    %298 = vmatpush1.bf16.msra.mxu0 0
    %299 = vmatprep.subr.bf16.mxu0 0
    %300 = vmatpush1.bf16.msra.mxu0 %v284
    %301 = vmatprep.subr.bf16.mxu0 0
    %302 = vmatpush1.bf16.msra.mxu0 %v283
    %303 = vmatprep.subr.bf16.mxu0 0
    %304 = vmatpush2.bf16.msra.mxu0 0
    %305 = vmatprep.subr.bf16.mxu0 0
    %306 = vmatpush2.bf16.msra.mxu0 0
    %307 = vmatprep.subr.bf16.mxu0 0
    %308 = vmatpush2.bf16.msra.mxu0 0
    %309 = vmatprep.subr.bf16.mxu0 0
    %310 = vmatpush2.bf16.msra.mxu0 0
    %311 = vmatprep.subr.bf16.mxu0 0
    %312 = vmatpush2.bf16.msra.mxu0 0
    %313 = vmatprep.subr.bf16.mxu0 0
    %314 = vmatpush2.bf16.msra.mxu0 0
    %315 = vmatprep.subr.bf16.mxu0 0
    %316 = vmatpush2.bf16.msra.mxu0 0
    %317 = vmatprep.subr.bf16.mxu0 0
    %318 = vmatpush2.bf16.msra.mxu0 0
    %319 = vmatprep.mubr.bf16.mxu0 0
    %320 = vmatmul.mubr.bf16.gmra.mxu0 %v169
    %v321 = vpop.f32.mrf.mxu0
    %v322 = vadd.f32 0.0, %v321
    %v323 = vpop.f32.mrf.mxu0
    %v324 = vpop.f32.mrf.mxu0
    %v325 = vadd.f32 0.0, %v324
    %v326 = vpop.f32.mrf.mxu0
    %327 = vdwg.mxu0
    %329 = vset.pattern.permute.xlu0 0
    %330 = vperm.xlu0 %329, %v37
    %v331 = vpop.permute.xlu0 %330
    %334 = vset.pattern.permute.xlu0 0
    %335 = vperm.xlu0 %334, %v38
    %v336 = vpop.permute.xlu0 %335
    %v338 = vmul.f32 %v322, %v331
    %v339 = vmul.f32 %v325, %v336
    %341 = vset.pattern.permute.xlu0 0
    %342 = vperm.xlu0 %341, %v35
    %v343 = vpop.permute.xlu0 %342
    %346 = vset.pattern.permute.xlu0 0
    %347 = vperm.xlu0 %346, %v36
    %v348 = vpop.permute.xlu0 %347
    %v350 = vmul.f32 %v322, %v343
    %v351 = vmul.f32 %v325, %v348
    %354 = vrot.lane.b32.xlu0 %v338, 32
    %v355 = vpop.permute.xlu0 %354
    %356 = vrot.lane.b32.xlu0 %v339, 32
    %v357 = vpop.permute.xlu0 %356
    %v360 = vsel %vm95, %v338, %v355
    %v361 = vsel %vm95, %v339, %v357
    %v362 = vmul.f32 %v360, %v139
    %v363 = vmul.f32 %v361, %v140
    %364 = vxpose.xlu0.b32.start [1/16] %v264, 128
    %365 = vxpose.xlu0.b32.cont [2/16] %v267, 128
    %366 = vxpose.xlu0.b32.cont [3/16] 0.0, 128
    %367 = vxpose.xlu0.b32.cont [4/16] 0.0, 128
    %368 = vxpose.xlu0.b32.cont [5/16] 0.0, 128
    %369 = vxpose.xlu0.b32.cont [6/16] 0.0, 128
    %370 = vxpose.xlu0.b32.cont [7/16] 0.0, 128
    %371 = vxpose.xlu0.b32.cont [8/16] 0.0, 128
    %372 = vxpose.xlu0.b32.cont [9/16] 0.0, 128
    %373 = vxpose.xlu0.b32.cont [10/16] 0.0, 128
    %374 = vxpose.xlu0.b32.cont [11/16] 0.0, 128
    %375 = vxpose.xlu0.b32.cont [12/16] 0.0, 128
    %376 = vxpose.xlu0.b32.cont [13/16] 0.0, 128
    %377 = vxpose.xlu0.b32.cont [14/16] 0.0, 128
    %378 = vxpose.xlu0.b32.cont [15/16] 0.0, 128
    %379 = vxpose.xlu0.b32.end [16/16] 0.0, 128
    %v380 = vpop.trf.xlu0
    %v381 = vpop.trf.xlu0
    %v382 = vpop.trf.xlu0
    %v383 = vpop.trf.xlu0
    %v384 = vpop.trf.xlu0
    %v385 = vpop.trf.xlu0
    %v386 = vpop.trf.xlu0
    %v387 = vpop.trf.xlu0
    %v388 = vpop.trf.xlu0
    %v389 = vpop.trf.xlu0
    %v390 = vpop.trf.xlu0
    %v391 = vpop.trf.xlu0
    %v392 = vpop.trf.xlu0
    %v393 = vpop.trf.xlu0
    %v394 = vpop.trf.xlu0
    %v395 = vpop.trf.xlu0
    %v397 = vsel %vm48, %v380, 0
    %v400 = vsel %vm48, %v381, 0
    %v403 = vsel %vm48, %v382, 0
    %v406 = vsel %vm48, %v383, 0
    %408 = vmatprep.subr.mxu0 0.0
    %409 = vmatpush1.msra.mxu0 0.0
    %410 = vmatprep.subr.mxu0 0.0
    %411 = vmatpush1.msra.mxu0 0.0
    %412 = vmatprep.subr.mxu0 0.0
    %413 = vmatpush1.msra.mxu0 0.0
    %414 = vmatprep.subr.mxu0 0.0
    %415 = vmatpush1.msra.mxu0 0.0
    %416 = vmatprep.subr.mxu0 0.0
    %417 = vmatpush1.msra.mxu0 0.0
    %418 = vmatprep.subr.mxu0 0.0
    %419 = vmatpush1.msra.mxu0 0.0
    %420 = vmatprep.subr.mxu0 0.0
    %421 = vmatpush1.msra.mxu0 0.0
    %422 = vmatprep.subr.mxu0 0.0
    %423 = vmatpush1.msra.mxu0 0.0
    %424 = vmatprep.subr.mxu0 0.0
    %425 = vmatpush1.msra.mxu0 0.0
    %426 = vmatprep.subr.mxu0 0.0
    %427 = vmatpush1.msra.mxu0 0.0
    %428 = vmatprep.subr.mxu0 0.0
    %429 = vmatpush1.msra.mxu0 0.0
    %430 = vmatprep.subr.mxu0 0.0
    %431 = vmatpush1.msra.mxu0 0.0
    %432 = vmatprep.subr.mxu0 0.0
    %433 = vmatpush1.msra.mxu0 0.0
    %434 = vmatprep.subr.mxu0 0.0
    %435 = vmatpush1.msra.mxu0 0.0
    %436 = vmatprep.subr.mxu0 0.0
    %437 = vmatpush1.msra.mxu0 %v363
    %438 = vmatprep.subr.mxu0 0.0
    %439 = vmatpush1.msra.mxu0 %v362
    %440 = vmatprep.subr.mxu0 0.0
    %441 = vmatpush2.msra.mxu0 0.0
    %442 = vmatprep.subr.mxu0 0.0
    %443 = vmatpush2.msra.mxu0 0.0
    %444 = vmatprep.subr.mxu0 0.0
    %445 = vmatpush2.msra.mxu0 0.0
    %446 = vmatprep.subr.mxu0 0.0
    %447 = vmatpush2.msra.mxu0 0.0
    %448 = vmatprep.subr.mxu0 0.0
    %449 = vmatpush2.msra.mxu0 0.0
    %450 = vmatprep.subr.mxu0 0.0
    %451 = vmatpush2.msra.mxu0 0.0
    %452 = vmatprep.subr.mxu0 0.0
    %453 = vmatpush2.msra.mxu0 0.0
    %454 = vmatprep.subr.mxu0 0.0
    %455 = vmatpush2.msra.mxu0 0.0
    %456 = vmatprep.subr.mxu0 0.0
    %457 = vmatpush2.msra.mxu0 0.0
    %458 = vmatprep.subr.mxu0 0.0
    %459 = vmatpush2.msra.mxu0 0.0
    %460 = vmatprep.subr.mxu0 0.0
    %461 = vmatpush2.msra.mxu0 0.0
    %462 = vmatprep.subr.mxu0 0.0
    %463 = vmatpush2.msra.mxu0 0.0
    %464 = vmatprep.subr.mxu0 0.0
    %465 = vmatpush2.msra.mxu0 0.0
    %466 = vmatprep.subr.mxu0 0.0
    %467 = vmatpush2.msra.mxu0 0.0
    %468 = vmatprep.subr.mxu0 0.0
    %469 = vmatpush2.msra.mxu0 0.0
    %470 = vmatprep.subr.mxu0 0.0
    %471 = vmatpush2.msra.mxu0 0.0
    %472 = vmatprep.mubr.f32.mxu0 0.0
    %473 = vmatmul.mubr.f32.gmra.mxu0 %v397
    %v474 = vpop.f32.mrf.mxu0
    %v475 = vadd.f32 0.0, %v474
    %v476 = vpop.f32.mrf.mxu0
    %477 = vmatprep.mubr.f32.mxu0 0.0
    %478 = vmatmul.mubr.f32.gmra.mxu0 %v400
    %v479 = vpop.f32.mrf.mxu0
    %v480 = vadd.f32 0.0, %v479
    %v481 = vpop.f32.mrf.mxu0
    %482 = vmatprep.mubr.f32.mxu0 0.0
    %483 = vmatmul.mubr.f32.gmra.mxu0 %v403
    %v484 = vpop.f32.mrf.mxu0
    %v485 = vadd.f32 0.0, %v484
    %v486 = vpop.f32.mrf.mxu0
    %487 = vmatprep.mubr.f32.mxu0 0.0
    %488 = vmatmul.mubr.f32.gmra.mxu0 %v406
    %v489 = vpop.f32.mrf.mxu0
    %v490 = vadd.f32 0.0, %v489
    %v491 = vpop.f32.mrf.mxu0
    %492 = vdwg.mxu0
    %v493 = vmul.f32 %v475, %v135
    %v494 = vmul.f32 %v480, %v136
    %v495 = vmul.f32 %v485, %v137
    %v496 = vmul.f32 %v490, %v138
    %v498 = vsel %vm95, %v206, 0
    %v501 = vsel %vm95, %v209, 0
    %503 = vmatprep.subr.mxu0 0.0
    %504 = vmatpush1.msra.mxu0 0.0
    %505 = vmatprep.subr.mxu0 0.0
    %506 = vmatpush1.msra.mxu0 0.0
    %507 = vmatprep.subr.mxu0 0.0
    %508 = vmatpush1.msra.mxu0 0.0
    %509 = vmatprep.subr.mxu0 0.0
    %510 = vmatpush1.msra.mxu0 0.0
    %511 = vmatprep.subr.mxu0 0.0
    %512 = vmatpush1.msra.mxu0 0.0
    %513 = vmatprep.subr.mxu0 0.0
    %514 = vmatpush1.msra.mxu0 0.0
    %515 = vmatprep.subr.mxu0 0.0
    %516 = vmatpush1.msra.mxu0 0.0
    %517 = vmatprep.subr.mxu0 0.0
    %518 = vmatpush1.msra.mxu0 0.0
    %519 = vmatprep.subr.mxu0 0.0
    %520 = vmatpush1.msra.mxu0 0.0
    %521 = vmatprep.subr.mxu0 0.0
    %522 = vmatpush1.msra.mxu0 0.0
    %523 = vmatprep.subr.mxu0 0.0
    %524 = vmatpush1.msra.mxu0 0.0
    %525 = vmatprep.subr.mxu0 0.0
    %526 = vmatpush1.msra.mxu0 0.0
    %527 = vmatprep.subr.mxu0 0.0
    %528 = vmatpush1.msra.mxu0 %v496
    %529 = vmatprep.subr.mxu0 0.0
    %530 = vmatpush1.msra.mxu0 %v495
    %531 = vmatprep.subr.mxu0 0.0
    %532 = vmatpush1.msra.mxu0 %v494
    %533 = vmatprep.subr.mxu0 0.0
    %534 = vmatpush1.msra.mxu0 %v493
    %535 = vmatprep.subr.mxu0 0.0
    %536 = vmatpush2.msra.mxu0 0.0
    %537 = vmatprep.subr.mxu0 0.0
    %538 = vmatpush2.msra.mxu0 0.0
    %539 = vmatprep.subr.mxu0 0.0
    %540 = vmatpush2.msra.mxu0 0.0
    %541 = vmatprep.subr.mxu0 0.0
    %542 = vmatpush2.msra.mxu0 0.0
    %543 = vmatprep.subr.mxu0 0.0
    %544 = vmatpush2.msra.mxu0 0.0
    %545 = vmatprep.subr.mxu0 0.0
    %546 = vmatpush2.msra.mxu0 0.0
    %547 = vmatprep.subr.mxu0 0.0
    %548 = vmatpush2.msra.mxu0 0.0
    %549 = vmatprep.subr.mxu0 0.0
    %550 = vmatpush2.msra.mxu0 0.0
    %551 = vmatprep.subr.mxu0 0.0
    %552 = vmatpush2.msra.mxu0 0.0
    %553 = vmatprep.subr.mxu0 0.0
    %554 = vmatpush2.msra.mxu0 0.0
    %555 = vmatprep.subr.mxu0 0.0
    %556 = vmatpush2.msra.mxu0 0.0
    %557 = vmatprep.subr.mxu0 0.0
    %558 = vmatpush2.msra.mxu0 0.0
    %559 = vmatprep.subr.mxu0 0.0
    %560 = vmatpush2.msra.mxu0 0.0
    %561 = vmatprep.subr.mxu0 0.0
    %562 = vmatpush2.msra.mxu0 0.0
    %563 = vmatprep.subr.mxu0 0.0
    %564 = vmatpush2.msra.mxu0 0.0
    %565 = vmatprep.subr.mxu0 0.0
    %566 = vmatpush2.msra.mxu0 0.0
    %567 = vmatprep.mubr.f32.mxu0 0.0
    %568 = vmatmul.mubr.f32.gmra.mxu0 %v498
    %v569 = vpop.f32.mrf.mxu0
    %v570 = vadd.f32 0.0, %v569
    %v571 = vpop.f32.mrf.mxu0
    %572 = vmatprep.mubr.f32.mxu0 0.0
    %573 = vmatmul.mubr.f32.gmra.mxu0 %v501
    %v574 = vpop.f32.mrf.mxu0
    %v575 = vadd.f32 0.0, %v574
    %v576 = vpop.f32.mrf.mxu0
    %577 = vdwg.mxu0
    %v578 = vmul.f32 %v570, %v139
    %v579 = vmul.f32 %v575, %v140
    %vm580 = vcmask 523264
    %v582 = vsel %vm580, %v578, 0
    %v585 = vsel %vm580, %v579, 0
    %587 = vmatprep.subr.mxu0 0.0
    %588 = vmatpush1.msra.mxu0 0.0
    %589 = vmatprep.subr.mxu0 0.0
    %590 = vmatpush1.msra.mxu0 0.0
    %591 = vmatprep.subr.mxu0 0.0
    %592 = vmatpush1.msra.mxu0 0.0
    %593 = vmatprep.subr.mxu0 0.0
    %594 = vmatpush1.msra.mxu0 0.0
    %595 = vmatprep.subr.mxu0 0.0
    %596 = vmatpush1.msra.mxu0 0.0
    %597 = vmatprep.subr.mxu0 0.0
    %598 = vmatpush1.msra.mxu0 0.0
    %599 = vmatprep.subr.mxu0 0.0
    %600 = vmatpush1.msra.mxu0 0.0
    %601 = vmatprep.subr.mxu0 0.0
    %602 = vmatpush1.msra.mxu0 0.0
    %603 = vmatprep.subr.mxu0 0.0
    %604 = vmatpush1.msra.mxu0 %v148
    %605 = vmatprep.subr.mxu0 0.0
    %606 = vmatpush1.msra.mxu0 %v147
    %607 = vmatprep.subr.mxu0 0.0
    %608 = vmatpush1.msra.mxu0 %v146
    %609 = vmatprep.subr.mxu0 0.0
    %610 = vmatpush1.msra.mxu0 %v145
    %611 = vmatprep.subr.mxu0 0.0
    %612 = vmatpush1.msra.mxu0 %v144
    %613 = vmatprep.subr.mxu0 0.0
    %614 = vmatpush1.msra.mxu0 %v143
    %615 = vmatprep.subr.mxu0 0.0
    %616 = vmatpush1.msra.mxu0 %v142
    %617 = vmatprep.subr.mxu0 0.0
    %618 = vmatpush1.msra.mxu0 %v141
    %619 = vmatprep.subr.mxu0 0.0
    %620 = vmatpush2.msra.mxu0 0.0
    %621 = vmatprep.subr.mxu0 0.0
    %622 = vmatpush2.msra.mxu0 0.0
    %623 = vmatprep.subr.mxu0 0.0
    %624 = vmatpush2.msra.mxu0 0.0
    %625 = vmatprep.subr.mxu0 0.0
    %626 = vmatpush2.msra.mxu0 0.0
    %627 = vmatprep.subr.mxu0 0.0
    %628 = vmatpush2.msra.mxu0 0.0
    %629 = vmatprep.subr.mxu0 0.0
    %630 = vmatpush2.msra.mxu0 0.0
    %631 = vmatprep.subr.mxu0 0.0
    %632 = vmatpush2.msra.mxu0 0.0
    %633 = vmatprep.subr.mxu0 0.0
    %634 = vmatpush2.msra.mxu0 0.0
    %635 = vmatprep.subr.mxu0 0.0
    %636 = vmatpush2.msra.mxu0 0.0
    %637 = vmatprep.subr.mxu0 0.0
    %638 = vmatpush2.msra.mxu0 0.0
    %639 = vmatprep.subr.mxu0 0.0
    %640 = vmatpush2.msra.mxu0 0.0
    %641 = vmatprep.subr.mxu0 0.0
    %642 = vmatpush2.msra.mxu0 0.0
    %643 = vmatprep.subr.mxu0 0.0
    %644 = vmatpush2.msra.mxu0 0.0
    %645 = vmatprep.subr.mxu0 0.0
    %646 = vmatpush2.msra.mxu0 0.0
    %647 = vmatprep.subr.mxu0 0.0
    %648 = vmatpush2.msra.mxu0 0.0
    %649 = vmatprep.subr.mxu0 0.0
    %650 = vmatpush2.msra.mxu0 0.0
    %651 = vmatprep.mubr.f32.mxu0 0.0
    %652 = vmatmul.mubr.f32.gmra.mxu0 %v582
    %v653 = vpop.f32.mrf.mxu0
    %v654 = vadd.f32 0.0, %v653
    %v655 = vpop.f32.mrf.mxu0
    %656 = vmatprep.mubr.f32.mxu0 0.0
    %657 = vmatmul.mubr.f32.gmra.mxu0 %v585
    %v658 = vpop.f32.mrf.mxu0
    %v659 = vadd.f32 0.0, %v658
    %v660 = vpop.f32.mrf.mxu0
    %661 = vdwg.mxu0
    %v663 = vsel %vm48, %v149, 0
    %v666 = vsel %vm48, %v150, 0
    %668 = vmatprep.subr.mxu0 0.0
    %669 = vmatpush1.msra.mxu0 0.0
    %670 = vmatprep.subr.mxu0 0.0
    %671 = vmatpush1.msra.mxu0 0.0
    %672 = vmatprep.subr.mxu0 0.0
    %673 = vmatpush1.msra.mxu0 0.0
    %674 = vmatprep.subr.mxu0 0.0
    %675 = vmatpush1.msra.mxu0 0.0
    %676 = vmatprep.subr.mxu0 0.0
    %677 = vmatpush1.msra.mxu0 0.0
    %678 = vmatprep.subr.mxu0 0.0
    %679 = vmatpush1.msra.mxu0 0.0
    %680 = vmatprep.subr.mxu0 0.0
    %681 = vmatpush1.msra.mxu0 0.0
    %682 = vmatprep.subr.mxu0 0.0
    %683 = vmatpush1.msra.mxu0 0.0
    %684 = vmatprep.subr.mxu0 0.0
    %685 = vmatpush1.msra.mxu0 0.0
    %686 = vmatprep.subr.mxu0 0.0
    %687 = vmatpush1.msra.mxu0 0.0
    %688 = vmatprep.subr.mxu0 0.0
    %689 = vmatpush1.msra.mxu0 0.0
    %690 = vmatprep.subr.mxu0 0.0
    %691 = vmatpush1.msra.mxu0 0.0
    %692 = vmatprep.subr.mxu0 0.0
    %693 = vmatpush1.msra.mxu0 0.0
    %694 = vmatprep.subr.mxu0 0.0
    %695 = vmatpush1.msra.mxu0 0.0
    %696 = vmatprep.subr.mxu0 0.0
    %697 = vmatpush1.msra.mxu0 %v351
    %698 = vmatprep.subr.mxu0 0.0
    %699 = vmatpush1.msra.mxu0 %v350
    %700 = vmatprep.subr.mxu0 0.0
    %701 = vmatpush2.msra.mxu0 0.0
    %702 = vmatprep.subr.mxu0 0.0
    %703 = vmatpush2.msra.mxu0 0.0
    %704 = vmatprep.subr.mxu0 0.0
    %705 = vmatpush2.msra.mxu0 0.0
    %706 = vmatprep.subr.mxu0 0.0
    %707 = vmatpush2.msra.mxu0 0.0
    %708 = vmatprep.subr.mxu0 0.0
    %709 = vmatpush2.msra.mxu0 0.0
    %710 = vmatprep.subr.mxu0 0.0
    %711 = vmatpush2.msra.mxu0 0.0
    %712 = vmatprep.subr.mxu0 0.0
    %713 = vmatpush2.msra.mxu0 0.0
    %714 = vmatprep.subr.mxu0 0.0
    %715 = vmatpush2.msra.mxu0 0.0
    %716 = vmatprep.subr.mxu0 0.0
    %717 = vmatpush2.msra.mxu0 0.0
    %718 = vmatprep.subr.mxu0 0.0
    %719 = vmatpush2.msra.mxu0 0.0
    %720 = vmatprep.subr.mxu0 0.0
    %721 = vmatpush2.msra.mxu0 0.0
    %722 = vmatprep.subr.mxu0 0.0
    %723 = vmatpush2.msra.mxu0 0.0
    %724 = vmatprep.subr.mxu0 0.0
    %725 = vmatpush2.msra.mxu0 0.0
    %726 = vmatprep.subr.mxu0 0.0
    %727 = vmatpush2.msra.mxu0 0.0
    %728 = vmatprep.subr.mxu0 0.0
    %729 = vmatpush2.msra.mxu0 0.0
    %730 = vmatprep.subr.mxu0 0.0
    %731 = vmatpush2.msra.mxu0 0.0
    %732 = vmatprep.mubr.f32.mxu0 0.0
    %733 = vmatmul.mubr.f32.gmra.mxu0 %v663
    %v734 = vpop.f32.mrf.mxu0
    %v735 = vadd.f32 0.0, %v734
    %v736 = vpop.f32.mrf.mxu0
    %737 = vmatprep.mubr.f32.mxu0 0.0
    %738 = vmatmul.mubr.f32.gmra.mxu0 %v666
    %v739 = vpop.f32.mrf.mxu0
    %v740 = vadd.f32 0.0, %v739
    %v741 = vpop.f32.mrf.mxu0
    %742 = vdwg.mxu0
    %v743 = vmul.f32 %v735, -1e+09
    %v744 = vmul.f32 %v740, -1e+09
    %v745 = vmul.f32 %v654, 0.5
    %v746 = vmul.f32 %v659, 0.5
    %v747 = vadd.f32 %v745, %v743
    %v748 = vadd.f32 %v746, %v744
    %v749 = vld [vmem:[%s3] sm:$0xff]
    %v750 = vld [vmem:[%s3 + $0x8] sm:$0xff]
    %v751 = vld [vmem:[%s3 + $0x10] sm:$0xff]
    %v752 = vld [vmem:[%s3 + $0x18] sm:$0xff]
    %v753 = vld [vmem:[%s6 + $0x2] sm:$0x1]
    %v754 = vlaneseq
    %v755 = vshrl.u32 %v754, 7
    %v756 = vsub.s32 0, %v755
    %v757 = vrot.slane %v753, %v756
    %v759 = vsel %vm95, %v747, 0
    %v762 = vsel %vm95, %v748, 0
    %764 = vmatprep.subr.mxu0 0.0
    %765 = vmatpush1.msra.mxu0 0.0
    %766 = vmatprep.subr.mxu0 0.0
    %767 = vmatpush1.msra.mxu0 0.0
    %768 = vmatprep.subr.mxu0 0.0
    %769 = vmatpush1.msra.mxu0 0.0
    %770 = vmatprep.subr.mxu0 0.0
    %771 = vmatpush1.msra.mxu0 0.0
    %772 = vmatprep.subr.mxu0 0.0
    %773 = vmatpush1.msra.mxu0 0.0
    %774 = vmatprep.subr.mxu0 0.0
    %775 = vmatpush1.msra.mxu0 0.0
    %776 = vmatprep.subr.mxu0 0.0
    %777 = vmatpush1.msra.mxu0 0.0
    %778 = vmatprep.subr.mxu0 0.0
    %779 = vmatpush1.msra.mxu0 0.0
    %780 = vmatprep.subr.mxu0 0.0
    %781 = vmatpush1.msra.mxu0 0.0
    %782 = vmatprep.subr.mxu0 0.0
    %783 = vmatpush1.msra.mxu0 0.0
    %784 = vmatprep.subr.mxu0 0.0
    %785 = vmatpush1.msra.mxu0 0.0
    %786 = vmatprep.subr.mxu0 0.0
    %787 = vmatpush1.msra.mxu0 0.0
    %788 = vmatprep.subr.mxu0 0.0
    %789 = vmatpush1.msra.mxu0 %v752
    %790 = vmatprep.subr.mxu0 0.0
    %791 = vmatpush1.msra.mxu0 %v751
    %792 = vmatprep.subr.mxu0 0.0
    %793 = vmatpush1.msra.mxu0 %v750
    %794 = vmatprep.subr.mxu0 0.0
    %795 = vmatpush1.msra.mxu0 %v749
    %796 = vmatprep.subr.mxu0 0.0
    %797 = vmatpush2.msra.mxu0 0.0
    %798 = vmatprep.subr.mxu0 0.0
    %799 = vmatpush2.msra.mxu0 0.0
    %800 = vmatprep.subr.mxu0 0.0
    %801 = vmatpush2.msra.mxu0 0.0
    %802 = vmatprep.subr.mxu0 0.0
    %803 = vmatpush2.msra.mxu0 0.0
    %804 = vmatprep.subr.mxu0 0.0
    %805 = vmatpush2.msra.mxu0 0.0
    %806 = vmatprep.subr.mxu0 0.0
    %807 = vmatpush2.msra.mxu0 0.0
    %808 = vmatprep.subr.mxu0 0.0
    %809 = vmatpush2.msra.mxu0 0.0
    %810 = vmatprep.subr.mxu0 0.0
    %811 = vmatpush2.msra.mxu0 0.0
    %812 = vmatprep.subr.mxu0 0.0
    %813 = vmatpush2.msra.mxu0 0.0
    %814 = vmatprep.subr.mxu0 0.0
    %815 = vmatpush2.msra.mxu0 0.0
    %816 = vmatprep.subr.mxu0 0.0
    %817 = vmatpush2.msra.mxu0 0.0
    %818 = vmatprep.subr.mxu0 0.0
    %819 = vmatpush2.msra.mxu0 0.0
    %820 = vmatprep.subr.mxu0 0.0
    %821 = vmatpush2.msra.mxu0 0.0
    %822 = vmatprep.subr.mxu0 0.0
    %823 = vmatpush2.msra.mxu0 0.0
    %824 = vmatprep.subr.mxu0 0.0
    %825 = vmatpush2.msra.mxu0 0.0
    %826 = vmatprep.subr.mxu0 0.0
    %827 = vmatpush2.msra.mxu0 0.0
    %828 = vmatprep.mubr.f32.mxu0 0.0
    %829 = vmatmul.mubr.f32.gmra.mxu0 %v759
    %v830 = vpop.f32.mrf.mxu0
    %v831 = vadd.f32 %v757, %v830
    %v832 = vpop.f32.mrf.mxu0
    %833 = vmatprep.mubr.f32.mxu0 0.0
    %834 = vmatmul.mubr.f32.gmra.mxu0 %v762
    %v835 = vpop.f32.mrf.mxu0
    %v836 = vadd.f32 %v757, %v835
    %v837 = vpop.f32.mrf.mxu0
    %838 = vdwg.mxu0
    %v839 = vadd.f32 %v133, %v831
    %v840 = vadd.f32 %v134, %v836
    %v841 = vld [vmem:[%s6 + $0x3] sm:$0x1]
    %v842 = vld [vmem:[%s6 + $0x4] sm:$0x1]
    %v843 = vsel %vm95, %v839, 0.0
    %844 = vadd.xlane.f32.xlu0 %v843
    %v845 = vpop.xlane.xlu0 %844
    %v846 = vsel %vm95, %v840, 0.0
    %847 = vadd.xlane.f32.xlu0 %v846
    %v848 = vpop.xlane.xlu0 %847
    %v849 = vmul.f32 %v845, %v102
    %v850 = vmul.f32 %v848, %v102
    %v851 = vsub.f32 %v839, %v849
    %v852 = vsub.f32 %v840, %v850
    %v853 = vmul.f32 %v851, %v851
    %v854 = vmul.f32 %v852, %v852
    %v855 = vsel %vm95, %v853, 0.0
    %856 = vadd.xlane.f32.xlu0 %v855
    %v857 = vpop.xlane.xlu0 %856
    %v858 = vsel %vm95, %v854, 0.0
    %859 = vadd.xlane.f32.xlu0 %v858
    %v860 = vpop.xlane.xlu0 %859
    %v861 = vmul.f32 %v857, %v102
    %v862 = vmul.f32 %v860, %v102
    %v863 = vadd.f32 %v861, 1e-05
    %v864 = vadd.f32 %v862, 1e-05
    %v865 = vrsqrt.pop %v863
    %v866 = vrsqrt.pop %v864
    %v867 = vmul.f32 %v851, %v865
    %v868 = vmul.f32 %v852, %v866
    %v869 = vlaneseq
    %v870 = vshrl.u32 %v869, 7
    %v871 = vsub.s32 0, %v870
    %v872 = vrot.slane %v841, %v871
    %v873 = vmul.f32 %v867, %v872
    %v874 = vmul.f32 %v868, %v872
    %v875 = vlaneseq
    %v876 = vshrl.u32 %v875, 7
    %v877 = vsub.s32 0, %v876
    %v878 = vrot.slane %v842, %v877
    %v879 = vadd.f32 %v873, %v878
    %v880 = vadd.f32 %v874, %v878
    %v881 = vpack.c.bf16 %v880, %v879
    %v882 = vld [vmem:[%s4] sm:$0xf]
    %v883 = vld [vmem:[%s4 + $0x4] sm:$0xf]
    %v884 = vld [vmem:[%s4 + $0x8] sm:$0xf]
    %v885 = vld [vmem:[%s4 + $0xc] sm:$0xf]
    %v886 = vld [vmem:[%s6 + $0x5] sm:$0x1]
    %v887 = vlaneseq
    %v888 = vshrl.u32 %v887, 7
    %v889 = vsub.s32 0, %v888
    %v890 = vrot.slane %v886, %v889
    %v895 = vunpack.c.l.b16 %v882
    %v896 = vunpack.c.l.b16 %v883
    %v897 = vunpack.c.l.b16 %v884
    %v898 = vunpack.c.l.b16 %v885
    %v899 = vpack.c.b16 %v896, %v895
    %v900 = vpack.c.b16 %v898, %v897
    %v904 = vsel %vm95, %v881, 0
    %906 = vmatprep.subr.bf16.mxu0 0
    %907 = vmatpush1.bf16.msra.mxu0 0
    %908 = vmatprep.subr.bf16.mxu0 0
    %909 = vmatpush1.bf16.msra.mxu0 0
    %910 = vmatprep.subr.bf16.mxu0 0
    %911 = vmatpush1.bf16.msra.mxu0 0
    %912 = vmatprep.subr.bf16.mxu0 0
    %913 = vmatpush1.bf16.msra.mxu0 0
    %914 = vmatprep.subr.bf16.mxu0 0
    %915 = vmatpush1.bf16.msra.mxu0 0
    %916 = vmatprep.subr.bf16.mxu0 0
    %917 = vmatpush1.bf16.msra.mxu0 0
    %918 = vmatprep.subr.bf16.mxu0 0
    %919 = vmatpush1.bf16.msra.mxu0 %v900
    %920 = vmatprep.subr.bf16.mxu0 0
    %921 = vmatpush1.bf16.msra.mxu0 %v899
    %922 = vmatprep.subr.bf16.mxu0 0
    %923 = vmatpush2.bf16.msra.mxu0 0
    %924 = vmatprep.subr.bf16.mxu0 0
    %925 = vmatpush2.bf16.msra.mxu0 0
    %926 = vmatprep.subr.bf16.mxu0 0
    %927 = vmatpush2.bf16.msra.mxu0 0
    %928 = vmatprep.subr.bf16.mxu0 0
    %929 = vmatpush2.bf16.msra.mxu0 0
    %930 = vmatprep.subr.bf16.mxu0 0
    %931 = vmatpush2.bf16.msra.mxu0 0
    %932 = vmatprep.subr.bf16.mxu0 0
    %933 = vmatpush2.bf16.msra.mxu0 0
    %934 = vmatprep.subr.bf16.mxu0 0
    %935 = vmatpush2.bf16.msra.mxu0 0
    %936 = vmatprep.subr.bf16.mxu0 0
    %937 = vmatpush2.bf16.msra.mxu0 0
    %938 = vmatprep.mubr.bf16.mxu0 0
    %939 = vmatmul.mubr.bf16.gmra.mxu0 %v904
    %v940 = vpop.f32.mrf.mxu0
    %v941 = vadd.f32 %v890, %v940
    %v942 = vpop.f32.mrf.mxu0
    %v943 = vpop.f32.mrf.mxu0
    %v944 = vadd.f32 %v890, %v943
    %v945 = vpop.f32.mrf.mxu0
    %946 = vdwg.mxu0
    %v947 = vmul.f32 %v941, 0.5
    %v948 = vmul.f32 %v944, 0.5
    %v949 = vmul.f32 %v941, 0.70710677
    %v950 = vmul.f32 %v944, 0.70710677
    %v951 = verf.f32.pop %v949
    %v952 = verf.f32.pop %v950
    %v953 = vadd.f32 %v951, 1.0
    %v954 = vadd.f32 %v952, 1.0
    %v955 = vmul.f32 %v947, %v953
    %v956 = vmul.f32 %v948, %v954
    %v957 = vpack.c.bf16 %v956, %v955
    %v958 = vld [vmem:[%s5] sm:$0xf]
    %v959 = vld [vmem:[%s5 + $0x4] sm:$0xf]
    %v960 = vld [vmem:[%s5 + $0x8] sm:$0xf]
    %v961 = vld [vmem:[%s5 + $0xc] sm:$0xf]
    %v962 = vld [vmem:[%s5 + $0x10] sm:$0xf]
    %v963 = vld [vmem:[%s5 + $0x14] sm:$0xf]
    %v964 = vld [vmem:[%s5 + $0x18] sm:$0xf]
    %v965 = vld [vmem:[%s5 + $0x1c] sm:$0xf]
    %v966 = vld [vmem:[%s6 + $0x6] sm:$0x1]
    %v967 = vlaneseq
    %v968 = vshrl.u32 %v967, 7
    %v969 = vsub.s32 0, %v968
    %v970 = vrot.slane %v966, %v969
    %v979 = vunpack.c.l.b16 %v958
    %v980 = vunpack.c.l.b16 %v959
    %v981 = vunpack.c.l.b16 %v960
    %v982 = vunpack.c.l.b16 %v961
    %v983 = vunpack.c.l.b16 %v962
    %v984 = vunpack.c.l.b16 %v963
    %v985 = vunpack.c.l.b16 %v964
    %v986 = vunpack.c.l.b16 %v965
    %v987 = vpack.c.b16 %v980, %v979
    %v988 = vpack.c.b16 %v982, %v981
    %v989 = vpack.c.b16 %v984, %v983
    %v990 = vpack.c.b16 %v986, %v985
    %v996 = vsel %vm580, %v957, 0
    %998 = vmatprep.subr.bf16.mxu0 0
    %999 = vmatpush1.bf16.msra.mxu0 0
    %1000 = vmatprep.subr.bf16.mxu0 0
    %1001 = vmatpush1.bf16.msra.mxu0 0
    %1002 = vmatprep.subr.bf16.mxu0 0
    %1003 = vmatpush1.bf16.msra.mxu0 0
    %1004 = vmatprep.subr.bf16.mxu0 0
    %1005 = vmatpush1.bf16.msra.mxu0 0
    %1006 = vmatprep.subr.bf16.mxu0 0
    %1007 = vmatpush1.bf16.msra.mxu0 %v990
    %1008 = vmatprep.subr.bf16.mxu0 0
    %1009 = vmatpush1.bf16.msra.mxu0 %v989
    %1010 = vmatprep.subr.bf16.mxu0 0
    %1011 = vmatpush1.bf16.msra.mxu0 %v988
    %1012 = vmatprep.subr.bf16.mxu0 0
    %1013 = vmatpush1.bf16.msra.mxu0 %v987
    %1014 = vmatprep.subr.bf16.mxu0 0
    %1015 = vmatpush2.bf16.msra.mxu0 0
    %1016 = vmatprep.subr.bf16.mxu0 0
    %1017 = vmatpush2.bf16.msra.mxu0 0
    %1018 = vmatprep.subr.bf16.mxu0 0
    %1019 = vmatpush2.bf16.msra.mxu0 0
    %1020 = vmatprep.subr.bf16.mxu0 0
    %1021 = vmatpush2.bf16.msra.mxu0 0
    %1022 = vmatprep.subr.bf16.mxu0 0
    %1023 = vmatpush2.bf16.msra.mxu0 0
    %1024 = vmatprep.subr.bf16.mxu0 0
    %1025 = vmatpush2.bf16.msra.mxu0 0
    %1026 = vmatprep.subr.bf16.mxu0 0
    %1027 = vmatpush2.bf16.msra.mxu0 0
    %1028 = vmatprep.subr.bf16.mxu0 0
    %1029 = vmatpush2.bf16.msra.mxu0 0
    %1030 = vmatprep.mubr.bf16.mxu0 0
    %1031 = vmatmul.mubr.bf16.gmra.mxu0 %v996
    %v1032 = vpop.f32.mrf.mxu0
    %v1033 = vadd.f32 %v970, %v1032
    %v1034 = vpop.f32.mrf.mxu0
    %v1035 = vpop.f32.mrf.mxu0
    %v1036 = vadd.f32 %v970, %v1035
    %v1037 = vpop.f32.mrf.mxu0
    %1038 = vdwg.mxu0
    %v1039 = vpack.c.bf16 %v1036, %v1033
    %s1040 = scalar_lea.vmem %s2, 48
    %v1041 = vld [vmem:[%s1040] sm:$0xf]
    %v1042 = vld [vmem:[%s1040 + $0x4] sm:$0xf]
    %v1043 = vld [vmem:[%s1040 + $0x8] sm:$0xf]
    %v1044 = vld [vmem:[%s1040 + $0xc] sm:$0xf]
    %v1049 = vunpack.c.l.b16 %v1041
    %v1050 = vunpack.c.l.b16 %v1042
    %v1051 = vunpack.c.l.b16 %v1043
    %v1052 = vunpack.c.l.b16 %v1044
    %v1053 = vpack.c.b16 %v1050, %v1049
    %v1054 = vpack.c.b16 %v1052, %v1051
    %v1058 = vsel %vm95, %v1039, 0
    %1060 = vmatprep.subr.bf16.mxu0 0
    %1061 = vmatpush1.bf16.msra.mxu0 0
    %1062 = vmatprep.subr.bf16.mxu0 0
    %1063 = vmatpush1.bf16.msra.mxu0 0
    %1064 = vmatprep.subr.bf16.mxu0 0
    %1065 = vmatpush1.bf16.msra.mxu0 0
    %1066 = vmatprep.subr.bf16.mxu0 0
    %1067 = vmatpush1.bf16.msra.mxu0 0
    %1068 = vmatprep.subr.bf16.mxu0 0
    %1069 = vmatpush1.bf16.msra.mxu0 0
    %1070 = vmatprep.subr.bf16.mxu0 0
    %1071 = vmatpush1.bf16.msra.mxu0 0
    %1072 = vmatprep.subr.bf16.mxu0 0
    %1073 = vmatpush1.bf16.msra.mxu0 %v1054
    %1074 = vmatprep.subr.bf16.mxu0 0
    %1075 = vmatpush1.bf16.msra.mxu0 %v1053
    %1076 = vmatprep.subr.bf16.mxu0 0
    %1077 = vmatpush2.bf16.msra.mxu0 0
    %1078 = vmatprep.subr.bf16.mxu0 0
    %1079 = vmatpush2.bf16.msra.mxu0 0
    %1080 = vmatprep.subr.bf16.mxu0 0
    %1081 = vmatpush2.bf16.msra.mxu0 0
    %1082 = vmatprep.subr.bf16.mxu0 0
    %1083 = vmatpush2.bf16.msra.mxu0 0
    %1084 = vmatprep.subr.bf16.mxu0 0
    %1085 = vmatpush2.bf16.msra.mxu0 0
    %1086 = vmatprep.subr.bf16.mxu0 0
    %1087 = vmatpush2.bf16.msra.mxu0 0
    %1088 = vmatprep.subr.bf16.mxu0 0
    %1089 = vmatpush2.bf16.msra.mxu0 0
    %1090 = vmatprep.subr.bf16.mxu0 0
    %1091 = vmatpush2.bf16.msra.mxu0 0
    %1092 = vmatprep.mubr.bf16.mxu0 0
    %1093 = vmatmul.mubr.bf16.gmra.mxu0 %v1058
    %v1094 = vpop.f32.mrf.mxu0
    %v1095 = vadd.f32 0.0, %v1094
    %v1096 = vpop.f32.mrf.mxu0
    %v1097 = vpop.f32.mrf.mxu0
    %v1098 = vadd.f32 0.0, %v1097
    %v1099 = vpop.f32.mrf.mxu0
    %1100 = vdwg.mxu0
    %s1101 = scalar_lea.vmem %s2, 64
    %v1102 = vld [vmem:[%s1101] sm:$0xf]
    %v1103 = vld [vmem:[%s1101 + $0x4] sm:$0xf]
    %v1104 = vld [vmem:[%s1101 + $0x8] sm:$0xf]
    %v1105 = vld [vmem:[%s1101 + $0xc] sm:$0xf]
    %v1110 = vunpack.c.l.b16 %v1102
    %v1111 = vunpack.c.l.b16 %v1103
    %v1112 = vunpack.c.l.b16 %v1104
    %v1113 = vunpack.c.l.b16 %v1105
    %v1114 = vpack.c.b16 %v1111, %v1110
    %v1115 = vpack.c.b16 %v1113, %v1112
    %1118 = vmatprep.subr.bf16.mxu0 0
    %1119 = vmatpush1.bf16.msra.mxu0 0
    %1120 = vmatprep.subr.bf16.mxu0 0
    %1121 = vmatpush1.bf16.msra.mxu0 0
    %1122 = vmatprep.subr.bf16.mxu0 0
    %1123 = vmatpush1.bf16.msra.mxu0 0
    %1124 = vmatprep.subr.bf16.mxu0 0
    %1125 = vmatpush1.bf16.msra.mxu0 0
    %1126 = vmatprep.subr.bf16.mxu0 0
    %1127 = vmatpush1.bf16.msra.mxu0 0
    %1128 = vmatprep.subr.bf16.mxu0 0
    %1129 = vmatpush1.bf16.msra.mxu0 0
    %1130 = vmatprep.subr.bf16.mxu0 0
    %1131 = vmatpush1.bf16.msra.mxu0 %v1115
    %1132 = vmatprep.subr.bf16.mxu0 0
    %1133 = vmatpush1.bf16.msra.mxu0 %v1114
    %1134 = vmatprep.subr.bf16.mxu0 0
    %1135 = vmatpush2.bf16.msra.mxu0 0
    %1136 = vmatprep.subr.bf16.mxu0 0
    %1137 = vmatpush2.bf16.msra.mxu0 0
    %1138 = vmatprep.subr.bf16.mxu0 0
    %1139 = vmatpush2.bf16.msra.mxu0 0
    %1140 = vmatprep.subr.bf16.mxu0 0
    %1141 = vmatpush2.bf16.msra.mxu0 0
    %1142 = vmatprep.subr.bf16.mxu0 0
    %1143 = vmatpush2.bf16.msra.mxu0 0
    %1144 = vmatprep.subr.bf16.mxu0 0
    %1145 = vmatpush2.bf16.msra.mxu0 0
    %1146 = vmatprep.subr.bf16.mxu0 0
    %1147 = vmatpush2.bf16.msra.mxu0 0
    %1148 = vmatprep.subr.bf16.mxu0 0
    %1149 = vmatpush2.bf16.msra.mxu0 0
    %1150 = vmatprep.mubr.bf16.mxu0 0
    %1151 = vmatmul.mubr.bf16.gmra.mxu0 %v1058
    %v1152 = vpop.f32.mrf.mxu0
    %v1153 = vadd.f32 0.0, %v1152
    %v1154 = vpop.f32.mrf.mxu0
    %v1155 = vpop.f32.mrf.mxu0
    %v1156 = vadd.f32 0.0, %v1155
    %v1157 = vpop.f32.mrf.mxu0
    %1158 = vdwg.mxu0
    %s1159 = scalar_lea.vmem %s2, 80
    %v1160 = vld [vmem:[%s1159] sm:$0xf]
    %v1161 = vld [vmem:[%s1159 + $0x4] sm:$0xf]
    %v1162 = vld [vmem:[%s1159 + $0x8] sm:$0xf]
    %v1163 = vld [vmem:[%s1159 + $0xc] sm:$0xf]
    %v1168 = vunpack.c.l.b16 %v1160
    %v1169 = vunpack.c.l.b16 %v1161
    %v1170 = vunpack.c.l.b16 %v1162
    %v1171 = vunpack.c.l.b16 %v1163
    %v1172 = vpack.c.b16 %v1169, %v1168
    %v1173 = vpack.c.b16 %v1171, %v1170
    %1176 = vmatprep.subr.bf16.mxu0 0
    %1177 = vmatpush1.bf16.msra.mxu0 0
    %1178 = vmatprep.subr.bf16.mxu0 0
    %1179 = vmatpush1.bf16.msra.mxu0 0
    %1180 = vmatprep.subr.bf16.mxu0 0
    %1181 = vmatpush1.bf16.msra.mxu0 0
    %1182 = vmatprep.subr.bf16.mxu0 0
    %1183 = vmatpush1.bf16.msra.mxu0 0
    %1184 = vmatprep.subr.bf16.mxu0 0
    %1185 = vmatpush1.bf16.msra.mxu0 0
    %1186 = vmatprep.subr.bf16.mxu0 0
    %1187 = vmatpush1.bf16.msra.mxu0 0
    %1188 = vmatprep.subr.bf16.mxu0 0
    %1189 = vmatpush1.bf16.msra.mxu0 %v1173
    %1190 = vmatprep.subr.bf16.mxu0 0
    %1191 = vmatpush1.bf16.msra.mxu0 %v1172
    %1192 = vmatprep.subr.bf16.mxu0 0
    %1193 = vmatpush2.bf16.msra.mxu0 0
    %1194 = vmatprep.subr.bf16.mxu0 0
    %1195 = vmatpush2.bf16.msra.mxu0 0
    %1196 = vmatprep.subr.bf16.mxu0 0
    %1197 = vmatpush2.bf16.msra.mxu0 0
    %1198 = vmatprep.subr.bf16.mxu0 0
    %1199 = vmatpush2.bf16.msra.mxu0 0
    %1200 = vmatprep.subr.bf16.mxu0 0
    %1201 = vmatpush2.bf16.msra.mxu0 0
    %1202 = vmatprep.subr.bf16.mxu0 0
    %1203 = vmatpush2.bf16.msra.mxu0 0
    %1204 = vmatprep.subr.bf16.mxu0 0
    %1205 = vmatpush2.bf16.msra.mxu0 0
    %1206 = vmatprep.subr.bf16.mxu0 0
    %1207 = vmatpush2.bf16.msra.mxu0 0
    %1208 = vmatprep.mubr.bf16.mxu0 0
    %1209 = vmatmul.mubr.bf16.gmra.mxu0 %v1058
    %v1210 = vpop.f32.mrf.mxu0
    %v1211 = vadd.f32 0.0, %v1210
    %v1212 = vpop.f32.mrf.mxu0
    %v1213 = vpop.f32.mrf.mxu0
    %v1214 = vadd.f32 0.0, %v1213
    %v1215 = vpop.f32.mrf.mxu0
    %1216 = vdwg.mxu0
    %v1217 = vmul.f32 %v1211, %v331
    %v1218 = vmul.f32 %v1214, %v336
    %v1219 = vmul.f32 %v1211, %v343
    %v1220 = vmul.f32 %v1214, %v348
    %1223 = vrot.lane.b32.xlu0 %v1217, 32
    %v1224 = vpop.permute.xlu0 %1223
    %1225 = vrot.lane.b32.xlu0 %v1218, 32
    %v1226 = vpop.permute.xlu0 %1225
    %v1229 = vsel %vm95, %v1217, %v1224
    %v1230 = vsel %vm95, %v1218, %v1226
    %v1231 = vmul.f32 %v1229, %v139
    %v1232 = vmul.f32 %v1230, %v140
    %1233 = vxpose.xlu0.b32.start [1/16] %v1153, 128
    %1234 = vxpose.xlu0.b32.cont [2/16] %v1156, 128
    %1235 = vxpose.xlu0.b32.cont [3/16] 0.0, 128
    %1236 = vxpose.xlu0.b32.cont [4/16] 0.0, 128
    %1237 = vxpose.xlu0.b32.cont [5/16] 0.0, 128
    %1238 = vxpose.xlu0.b32.cont [6/16] 0.0, 128
    %1239 = vxpose.xlu0.b32.cont [7/16] 0.0, 128
    %1240 = vxpose.xlu0.b32.cont [8/16] 0.0, 128
    %1241 = vxpose.xlu0.b32.cont [9/16] 0.0, 128
    %1242 = vxpose.xlu0.b32.cont [10/16] 0.0, 128
    %1243 = vxpose.xlu0.b32.cont [11/16] 0.0, 128
    %1244 = vxpose.xlu0.b32.cont [12/16] 0.0, 128
    %1245 = vxpose.xlu0.b32.cont [13/16] 0.0, 128
    %1246 = vxpose.xlu0.b32.cont [14/16] 0.0, 128
    %1247 = vxpose.xlu0.b32.cont [15/16] 0.0, 128
    %1248 = vxpose.xlu0.b32.end [16/16] 0.0, 128
    %v1249 = vpop.trf.xlu0
    %v1250 = vpop.trf.xlu0
    %v1251 = vpop.trf.xlu0
    %v1252 = vpop.trf.xlu0
    %v1253 = vpop.trf.xlu0
    %v1254 = vpop.trf.xlu0
    %v1255 = vpop.trf.xlu0
    %v1256 = vpop.trf.xlu0
    %v1257 = vpop.trf.xlu0
    %v1258 = vpop.trf.xlu0
    %v1259 = vpop.trf.xlu0
    %v1260 = vpop.trf.xlu0
    %v1261 = vpop.trf.xlu0
    %v1262 = vpop.trf.xlu0
    %v1263 = vpop.trf.xlu0
    %v1264 = vpop.trf.xlu0
    %v1266 = vsel %vm48, %v1249, 0
    %v1269 = vsel %vm48, %v1250, 0
    %v1272 = vsel %vm48, %v1251, 0
    %v1275 = vsel %vm48, %v1252, 0
    %1277 = vmatprep.subr.mxu0 0.0
    %1278 = vmatpush1.msra.mxu0 0.0
    %1279 = vmatprep.subr.mxu0 0.0
    %1280 = vmatpush1.msra.mxu0 0.0
    %1281 = vmatprep.subr.mxu0 0.0
    %1282 = vmatpush1.msra.mxu0 0.0
    %1283 = vmatprep.subr.mxu0 0.0
    %1284 = vmatpush1.msra.mxu0 0.0
    %1285 = vmatprep.subr.mxu0 0.0
    %1286 = vmatpush1.msra.mxu0 0.0
    %1287 = vmatprep.subr.mxu0 0.0
    %1288 = vmatpush1.msra.mxu0 0.0
    %1289 = vmatprep.subr.mxu0 0.0
    %1290 = vmatpush1.msra.mxu0 0.0
    %1291 = vmatprep.subr.mxu0 0.0
    %1292 = vmatpush1.msra.mxu0 0.0
    %1293 = vmatprep.subr.mxu0 0.0
    %1294 = vmatpush1.msra.mxu0 0.0
    %1295 = vmatprep.subr.mxu0 0.0
    %1296 = vmatpush1.msra.mxu0 0.0
    %1297 = vmatprep.subr.mxu0 0.0
    %1298 = vmatpush1.msra.mxu0 0.0
    %1299 = vmatprep.subr.mxu0 0.0
    %1300 = vmatpush1.msra.mxu0 0.0
    %1301 = vmatprep.subr.mxu0 0.0
    %1302 = vmatpush1.msra.mxu0 0.0
    %1303 = vmatprep.subr.mxu0 0.0
    %1304 = vmatpush1.msra.mxu0 0.0
    %1305 = vmatprep.subr.mxu0 0.0
    %1306 = vmatpush1.msra.mxu0 %v1232
    %1307 = vmatprep.subr.mxu0 0.0
    %1308 = vmatpush1.msra.mxu0 %v1231
    %1309 = vmatprep.subr.mxu0 0.0
    %1310 = vmatpush2.msra.mxu0 0.0
    %1311 = vmatprep.subr.mxu0 0.0
    %1312 = vmatpush2.msra.mxu0 0.0
    %1313 = vmatprep.subr.mxu0 0.0
    %1314 = vmatpush2.msra.mxu0 0.0
    %1315 = vmatprep.subr.mxu0 0.0
    %1316 = vmatpush2.msra.mxu0 0.0
    %1317 = vmatprep.subr.mxu0 0.0
    %1318 = vmatpush2.msra.mxu0 0.0
    %1319 = vmatprep.subr.mxu0 0.0
    %1320 = vmatpush2.msra.mxu0 0.0
    %1321 = vmatprep.subr.mxu0 0.0
    %1322 = vmatpush2.msra.mxu0 0.0
    %1323 = vmatprep.subr.mxu0 0.0
    %1324 = vmatpush2.msra.mxu0 0.0
    %1325 = vmatprep.subr.mxu0 0.0
    %1326 = vmatpush2.msra.mxu0 0.0
    %1327 = vmatprep.subr.mxu0 0.0
    %1328 = vmatpush2.msra.mxu0 0.0
    %1329 = vmatprep.subr.mxu0 0.0
    %1330 = vmatpush2.msra.mxu0 0.0
    %1331 = vmatprep.subr.mxu0 0.0
    %1332 = vmatpush2.msra.mxu0 0.0
    %1333 = vmatprep.subr.mxu0 0.0
    %1334 = vmatpush2.msra.mxu0 0.0
    %1335 = vmatprep.subr.mxu0 0.0
    %1336 = vmatpush2.msra.mxu0 0.0
    %1337 = vmatprep.subr.mxu0 0.0
    %1338 = vmatpush2.msra.mxu0 0.0
    %1339 = vmatprep.subr.mxu0 0.0
    %1340 = vmatpush2.msra.mxu0 0.0
    %1341 = vmatprep.mubr.f32.mxu0 0.0
    %1342 = vmatmul.mubr.f32.gmra.mxu0 %v1266
    %v1343 = vpop.f32.mrf.mxu0
    %v1344 = vadd.f32 0.0, %v1343
    %v1345 = vpop.f32.mrf.mxu0
    %1346 = vmatprep.mubr.f32.mxu0 0.0
    %1347 = vmatmul.mubr.f32.gmra.mxu0 %v1269
    %v1348 = vpop.f32.mrf.mxu0
    %v1349 = vadd.f32 0.0, %v1348
    %v1350 = vpop.f32.mrf.mxu0
    %1351 = vmatprep.mubr.f32.mxu0 0.0
    %1352 = vmatmul.mubr.f32.gmra.mxu0 %v1272
    %v1353 = vpop.f32.mrf.mxu0
    %v1354 = vadd.f32 0.0, %v1353
    %v1355 = vpop.f32.mrf.mxu0
    %1356 = vmatprep.mubr.f32.mxu0 0.0
    %1357 = vmatmul.mubr.f32.gmra.mxu0 %v1275
    %v1358 = vpop.f32.mrf.mxu0
    %v1359 = vadd.f32 0.0, %v1358
    %v1360 = vpop.f32.mrf.mxu0
    %1361 = vdwg.mxu0
    %v1362 = vmul.f32 %v1344, %v135
    %v1363 = vmul.f32 %v1349, %v136
    %v1364 = vmul.f32 %v1354, %v137
    %v1365 = vmul.f32 %v1359, %v138
    %v1367 = vsel %vm95, %v1095, 0
    %v1370 = vsel %vm95, %v1098, 0
    %1372 = vmatprep.subr.mxu0 0.0
    %1373 = vmatpush1.msra.mxu0 0.0
    %1374 = vmatprep.subr.mxu0 0.0
    %1375 = vmatpush1.msra.mxu0 0.0
    %1376 = vmatprep.subr.mxu0 0.0
    %1377 = vmatpush1.msra.mxu0 0.0
    %1378 = vmatprep.subr.mxu0 0.0
    %1379 = vmatpush1.msra.mxu0 0.0
    %1380 = vmatprep.subr.mxu0 0.0
    %1381 = vmatpush1.msra.mxu0 0.0
    %1382 = vmatprep.subr.mxu0 0.0
    %1383 = vmatpush1.msra.mxu0 0.0
    %1384 = vmatprep.subr.mxu0 0.0
    %1385 = vmatpush1.msra.mxu0 0.0
    %1386 = vmatprep.subr.mxu0 0.0
    %1387 = vmatpush1.msra.mxu0 0.0
    %1388 = vmatprep.subr.mxu0 0.0
    %1389 = vmatpush1.msra.mxu0 0.0
    %1390 = vmatprep.subr.mxu0 0.0
    %1391 = vmatpush1.msra.mxu0 0.0
    %1392 = vmatprep.subr.mxu0 0.0
    %1393 = vmatpush1.msra.mxu0 0.0
    %1394 = vmatprep.subr.mxu0 0.0
    %1395 = vmatpush1.msra.mxu0 0.0
    %1396 = vmatprep.subr.mxu0 0.0
    %1397 = vmatpush1.msra.mxu0 %v1365
    %1398 = vmatprep.subr.mxu0 0.0
    %1399 = vmatpush1.msra.mxu0 %v1364
    %1400 = vmatprep.subr.mxu0 0.0
    %1401 = vmatpush1.msra.mxu0 %v1363
    %1402 = vmatprep.subr.mxu0 0.0
    %1403 = vmatpush1.msra.mxu0 %v1362
    %1404 = vmatprep.subr.mxu0 0.0
    %1405 = vmatpush2.msra.mxu0 0.0
    %1406 = vmatprep.subr.mxu0 0.0
    %1407 = vmatpush2.msra.mxu0 0.0
    %1408 = vmatprep.subr.mxu0 0.0
    %1409 = vmatpush2.msra.mxu0 0.0
    %1410 = vmatprep.subr.mxu0 0.0
    %1411 = vmatpush2.msra.mxu0 0.0
    %1412 = vmatprep.subr.mxu0 0.0
    %1413 = vmatpush2.msra.mxu0 0.0
    %1414 = vmatprep.subr.mxu0 0.0
    %1415 = vmatpush2.msra.mxu0 0.0
    %1416 = vmatprep.subr.mxu0 0.0
    %1417 = vmatpush2.msra.mxu0 0.0
    %1418 = vmatprep.subr.mxu0 0.0
    %1419 = vmatpush2.msra.mxu0 0.0
    %1420 = vmatprep.subr.mxu0 0.0
    %1421 = vmatpush2.msra.mxu0 0.0
    %1422 = vmatprep.subr.mxu0 0.0
    %1423 = vmatpush2.msra.mxu0 0.0
    %1424 = vmatprep.subr.mxu0 0.0
    %1425 = vmatpush2.msra.mxu0 0.0
    %1426 = vmatprep.subr.mxu0 0.0
    %1427 = vmatpush2.msra.mxu0 0.0
    %1428 = vmatprep.subr.mxu0 0.0
    %1429 = vmatpush2.msra.mxu0 0.0
    %1430 = vmatprep.subr.mxu0 0.0
    %1431 = vmatpush2.msra.mxu0 0.0
    %1432 = vmatprep.subr.mxu0 0.0
    %1433 = vmatpush2.msra.mxu0 0.0
    %1434 = vmatprep.subr.mxu0 0.0
    %1435 = vmatpush2.msra.mxu0 0.0
    %1436 = vmatprep.mubr.f32.mxu0 0.0
    %1437 = vmatmul.mubr.f32.gmra.mxu0 %v1367
    %v1438 = vpop.f32.mrf.mxu0
    %v1439 = vadd.f32 0.0, %v1438
    %v1440 = vpop.f32.mrf.mxu0
    %1441 = vmatprep.mubr.f32.mxu0 0.0
    %1442 = vmatmul.mubr.f32.gmra.mxu0 %v1370
    %v1443 = vpop.f32.mrf.mxu0
    %v1444 = vadd.f32 0.0, %v1443
    %v1445 = vpop.f32.mrf.mxu0
    %1446 = vdwg.mxu0
    %v1447 = vmul.f32 %v1439, %v139
    %v1448 = vmul.f32 %v1444, %v140
    %v1450 = vsel %vm580, %v1447, 0
    %v1453 = vsel %vm580, %v1448, 0
    %1455 = vmatprep.subr.mxu0 0.0
    %1456 = vmatpush1.msra.mxu0 0.0
    %1457 = vmatprep.subr.mxu0 0.0
    %1458 = vmatpush1.msra.mxu0 0.0
    %1459 = vmatprep.subr.mxu0 0.0
    %1460 = vmatpush1.msra.mxu0 0.0
    %1461 = vmatprep.subr.mxu0 0.0
    %1462 = vmatpush1.msra.mxu0 0.0
    %1463 = vmatprep.subr.mxu0 0.0
    %1464 = vmatpush1.msra.mxu0 0.0
    %1465 = vmatprep.subr.mxu0 0.0
    %1466 = vmatpush1.msra.mxu0 0.0
    %1467 = vmatprep.subr.mxu0 0.0
    %1468 = vmatpush1.msra.mxu0 0.0
    %1469 = vmatprep.subr.mxu0 0.0
    %1470 = vmatpush1.msra.mxu0 0.0
    %1471 = vmatprep.subr.mxu0 0.0
    %1472 = vmatpush1.msra.mxu0 %v148
    %1473 = vmatprep.subr.mxu0 0.0
    %1474 = vmatpush1.msra.mxu0 %v147
    %1475 = vmatprep.subr.mxu0 0.0
    %1476 = vmatpush1.msra.mxu0 %v146
    %1477 = vmatprep.subr.mxu0 0.0
    %1478 = vmatpush1.msra.mxu0 %v145
    %1479 = vmatprep.subr.mxu0 0.0
    %1480 = vmatpush1.msra.mxu0 %v144
    %1481 = vmatprep.subr.mxu0 0.0
    %1482 = vmatpush1.msra.mxu0 %v143
    %1483 = vmatprep.subr.mxu0 0.0
    %1484 = vmatpush1.msra.mxu0 %v142
    %1485 = vmatprep.subr.mxu0 0.0
    %1486 = vmatpush1.msra.mxu0 %v141
    %1487 = vmatprep.subr.mxu0 0.0
    %1488 = vmatpush2.msra.mxu0 0.0
    %1489 = vmatprep.subr.mxu0 0.0
    %1490 = vmatpush2.msra.mxu0 0.0
    %1491 = vmatprep.subr.mxu0 0.0
    %1492 = vmatpush2.msra.mxu0 0.0
    %1493 = vmatprep.subr.mxu0 0.0
    %1494 = vmatpush2.msra.mxu0 0.0
    %1495 = vmatprep.subr.mxu0 0.0
    %1496 = vmatpush2.msra.mxu0 0.0
    %1497 = vmatprep.subr.mxu0 0.0
    %1498 = vmatpush2.msra.mxu0 0.0
    %1499 = vmatprep.subr.mxu0 0.0
    %1500 = vmatpush2.msra.mxu0 0.0
    %1501 = vmatprep.subr.mxu0 0.0
    %1502 = vmatpush2.msra.mxu0 0.0
    %1503 = vmatprep.subr.mxu0 0.0
    %1504 = vmatpush2.msra.mxu0 0.0
    %1505 = vmatprep.subr.mxu0 0.0
    %1506 = vmatpush2.msra.mxu0 0.0
    %1507 = vmatprep.subr.mxu0 0.0
    %1508 = vmatpush2.msra.mxu0 0.0
    %1509 = vmatprep.subr.mxu0 0.0
    %1510 = vmatpush2.msra.mxu0 0.0
    %1511 = vmatprep.subr.mxu0 0.0
    %1512 = vmatpush2.msra.mxu0 0.0
    %1513 = vmatprep.subr.mxu0 0.0
    %1514 = vmatpush2.msra.mxu0 0.0
    %1515 = vmatprep.subr.mxu0 0.0
    %1516 = vmatpush2.msra.mxu0 0.0
    %1517 = vmatprep.subr.mxu0 0.0
    %1518 = vmatpush2.msra.mxu0 0.0
    %1519 = vmatprep.mubr.f32.mxu0 0.0
    %1520 = vmatmul.mubr.f32.gmra.mxu0 %v1450
    %v1521 = vpop.f32.mrf.mxu0
    %v1522 = vadd.f32 0.0, %v1521
    %v1523 = vpop.f32.mrf.mxu0
    %1524 = vmatprep.mubr.f32.mxu0 0.0
    %1525 = vmatmul.mubr.f32.gmra.mxu0 %v1453
    %v1526 = vpop.f32.mrf.mxu0
    %v1527 = vadd.f32 0.0, %v1526
    %v1528 = vpop.f32.mrf.mxu0
    %1529 = vdwg.mxu0
    %1530 = vmatprep.subr.mxu0 0.0
    %1531 = vmatpush1.msra.mxu0 0.0
    %1532 = vmatprep.subr.mxu0 0.0
    %1533 = vmatpush1.msra.mxu0 0.0
    %1534 = vmatprep.subr.mxu0 0.0
    %1535 = vmatpush1.msra.mxu0 0.0
    %1536 = vmatprep.subr.mxu0 0.0
    %1537 = vmatpush1.msra.mxu0 0.0
    %1538 = vmatprep.subr.mxu0 0.0
    %1539 = vmatpush1.msra.mxu0 0.0
    %1540 = vmatprep.subr.mxu0 0.0
    %1541 = vmatpush1.msra.mxu0 0.0
    %1542 = vmatprep.subr.mxu0 0.0
    %1543 = vmatpush1.msra.mxu0 0.0
    %1544 = vmatprep.subr.mxu0 0.0
    %1545 = vmatpush1.msra.mxu0 0.0
    %1546 = vmatprep.subr.mxu0 0.0
    %1547 = vmatpush1.msra.mxu0 0.0
    %1548 = vmatprep.subr.mxu0 0.0
    %1549 = vmatpush1.msra.mxu0 0.0
    %1550 = vmatprep.subr.mxu0 0.0
    %1551 = vmatpush1.msra.mxu0 0.0
    %1552 = vmatprep.subr.mxu0 0.0
    %1553 = vmatpush1.msra.mxu0 0.0
    %1554 = vmatprep.subr.mxu0 0.0
    %1555 = vmatpush1.msra.mxu0 0.0
    %1556 = vmatprep.subr.mxu0 0.0
    %1557 = vmatpush1.msra.mxu0 0.0
    %1558 = vmatprep.subr.mxu0 0.0
    %1559 = vmatpush1.msra.mxu0 %v1220
    %1560 = vmatprep.subr.mxu0 0.0
    %1561 = vmatpush1.msra.mxu0 %v1219
    %1562 = vmatprep.subr.mxu0 0.0
    %1563 = vmatpush2.msra.mxu0 0.0
    %1564 = vmatprep.subr.mxu0 0.0
    %1565 = vmatpush2.msra.mxu0 0.0
    %1566 = vmatprep.subr.mxu0 0.0
    %1567 = vmatpush2.msra.mxu0 0.0
    %1568 = vmatprep.subr.mxu0 0.0
    %1569 = vmatpush2.msra.mxu0 0.0
    %1570 = vmatprep.subr.mxu0 0.0
    %1571 = vmatpush2.msra.mxu0 0.0
    %1572 = vmatprep.subr.mxu0 0.0
    %1573 = vmatpush2.msra.mxu0 0.0
    %1574 = vmatprep.subr.mxu0 0.0
    %1575 = vmatpush2.msra.mxu0 0.0
    %1576 = vmatprep.subr.mxu0 0.0
    %1577 = vmatpush2.msra.mxu0 0.0
    %1578 = vmatprep.subr.mxu0 0.0
    %1579 = vmatpush2.msra.mxu0 0.0
    %1580 = vmatprep.subr.mxu0 0.0
    %1581 = vmatpush2.msra.mxu0 0.0
    %1582 = vmatprep.subr.mxu0 0.0
    %1583 = vmatpush2.msra.mxu0 0.0
    %1584 = vmatprep.subr.mxu0 0.0
    %1585 = vmatpush2.msra.mxu0 0.0
    %1586 = vmatprep.subr.mxu0 0.0
    %1587 = vmatpush2.msra.mxu0 0.0
    %1588 = vmatprep.subr.mxu0 0.0
    %1589 = vmatpush2.msra.mxu0 0.0
    %1590 = vmatprep.subr.mxu0 0.0
    %1591 = vmatpush2.msra.mxu0 0.0
    %1592 = vmatprep.subr.mxu0 0.0
    %1593 = vmatpush2.msra.mxu0 0.0
    %1594 = vmatprep.mubr.f32.mxu0 0.0
    %1595 = vmatmul.mubr.f32.gmra.mxu0 %v663
    %v1596 = vpop.f32.mrf.mxu0
    %v1597 = vadd.f32 0.0, %v1596
    %v1598 = vpop.f32.mrf.mxu0
    %1599 = vmatprep.mubr.f32.mxu0 0.0
    %1600 = vmatmul.mubr.f32.gmra.mxu0 %v666
    %v1601 = vpop.f32.mrf.mxu0
    %v1602 = vadd.f32 0.0, %v1601
    %v1603 = vpop.f32.mrf.mxu0
    %1604 = vdwg.mxu0
    %v1605 = vmul.f32 %v1597, -1e+09
    %v1606 = vmul.f32 %v1602, -1e+09
    %v1607 = vmul.f32 %v1522, 0.5
    %v1608 = vmul.f32 %v1527, 0.5
    %v1609 = vadd.f32 %v1607, %v1605
    %v1610 = vadd.f32 %v1608, %v1606
    %s1611 = scalar_lea.vmem %s3, 32
    %v1612 = vld [vmem:[%s1611] sm:$0xff]
    %v1613 = vld [vmem:[%s1611 + $0x8] sm:$0xff]
    %v1614 = vld [vmem:[%s1611 + $0x10] sm:$0xff]
    %v1615 = vld [vmem:[%s1611 + $0x18] sm:$0xff]
    %v1616 = vld [vmem:[%s6 + $0x7] sm:$0x1]
    %v1617 = vlaneseq
    %v1618 = vshrl.u32 %v1617, 7
    %v1619 = vsub.s32 0, %v1618
    %v1620 = vrot.slane %v1616, %v1619
    %v1622 = vsel %vm95, %v1609, 0
    %v1625 = vsel %vm95, %v1610, 0
    %1627 = vmatprep.subr.mxu0 0.0
    %1628 = vmatpush1.msra.mxu0 0.0
    %1629 = vmatprep.subr.mxu0 0.0
    %1630 = vmatpush1.msra.mxu0 0.0
    %1631 = vmatprep.subr.mxu0 0.0
    %1632 = vmatpush1.msra.mxu0 0.0
    %1633 = vmatprep.subr.mxu0 0.0
    %1634 = vmatpush1.msra.mxu0 0.0
    %1635 = vmatprep.subr.mxu0 0.0
    %1636 = vmatpush1.msra.mxu0 0.0
    %1637 = vmatprep.subr.mxu0 0.0
    %1638 = vmatpush1.msra.mxu0 0.0
    %1639 = vmatprep.subr.mxu0 0.0
    %1640 = vmatpush1.msra.mxu0 0.0
    %1641 = vmatprep.subr.mxu0 0.0
    %1642 = vmatpush1.msra.mxu0 0.0
    %1643 = vmatprep.subr.mxu0 0.0
    %1644 = vmatpush1.msra.mxu0 0.0
    %1645 = vmatprep.subr.mxu0 0.0
    %1646 = vmatpush1.msra.mxu0 0.0
    %1647 = vmatprep.subr.mxu0 0.0
    %1648 = vmatpush1.msra.mxu0 0.0
    %1649 = vmatprep.subr.mxu0 0.0
    %1650 = vmatpush1.msra.mxu0 0.0
    %1651 = vmatprep.subr.mxu0 0.0
    %1652 = vmatpush1.msra.mxu0 %v1615
    %1653 = vmatprep.subr.mxu0 0.0
    %1654 = vmatpush1.msra.mxu0 %v1614
    %1655 = vmatprep.subr.mxu0 0.0
    %1656 = vmatpush1.msra.mxu0 %v1613
    %1657 = vmatprep.subr.mxu0 0.0
    %1658 = vmatpush1.msra.mxu0 %v1612
    %1659 = vmatprep.subr.mxu0 0.0
    %1660 = vmatpush2.msra.mxu0 0.0
    %1661 = vmatprep.subr.mxu0 0.0
    %1662 = vmatpush2.msra.mxu0 0.0
    %1663 = vmatprep.subr.mxu0 0.0
    %1664 = vmatpush2.msra.mxu0 0.0
    %1665 = vmatprep.subr.mxu0 0.0
    %1666 = vmatpush2.msra.mxu0 0.0
    %1667 = vmatprep.subr.mxu0 0.0
    %1668 = vmatpush2.msra.mxu0 0.0
    %1669 = vmatprep.subr.mxu0 0.0
    %1670 = vmatpush2.msra.mxu0 0.0
    %1671 = vmatprep.subr.mxu0 0.0
    %1672 = vmatpush2.msra.mxu0 0.0
    %1673 = vmatprep.subr.mxu0 0.0
    %1674 = vmatpush2.msra.mxu0 0.0
    %1675 = vmatprep.subr.mxu0 0.0
    %1676 = vmatpush2.msra.mxu0 0.0
    %1677 = vmatprep.subr.mxu0 0.0
    %1678 = vmatpush2.msra.mxu0 0.0
    %1679 = vmatprep.subr.mxu0 0.0
    %1680 = vmatpush2.msra.mxu0 0.0
    %1681 = vmatprep.subr.mxu0 0.0
    %1682 = vmatpush2.msra.mxu0 0.0
    %1683 = vmatprep.subr.mxu0 0.0
    %1684 = vmatpush2.msra.mxu0 0.0
    %1685 = vmatprep.subr.mxu0 0.0
    %1686 = vmatpush2.msra.mxu0 0.0
    %1687 = vmatprep.subr.mxu0 0.0
    %1688 = vmatpush2.msra.mxu0 0.0
    %1689 = vmatprep.subr.mxu0 0.0
    %1690 = vmatpush2.msra.mxu0 0.0
    %1691 = vmatprep.mubr.f32.mxu0 0.0
    %1692 = vmatmul.mubr.f32.gmra.mxu0 %v1622
    %v1693 = vpop.f32.mrf.mxu0
    %v1694 = vadd.f32 %v1620, %v1693
    %v1695 = vpop.f32.mrf.mxu0
    %1696 = vmatprep.mubr.f32.mxu0 0.0
    %1697 = vmatmul.mubr.f32.gmra.mxu0 %v1625
    %v1698 = vpop.f32.mrf.mxu0
    %v1699 = vadd.f32 %v1620, %v1698
    %v1700 = vpop.f32.mrf.mxu0
    %1701 = vdwg.mxu0
    %v1702 = vadd.f32 %v1033, %v1694
    %v1703 = vadd.f32 %v1036, %v1699
    %v1704 = vld [vmem:[%s6 + $0x8] sm:$0x1]
    %v1705 = vld [vmem:[%s6 + $0x9] sm:$0x1]
    %v1706 = vsel %vm95, %v1702, 0.0
    %1707 = vadd.xlane.f32.xlu0 %v1706
    %v1708 = vpop.xlane.xlu0 %1707
    %v1709 = vsel %vm95, %v1703, 0.0
    %1710 = vadd.xlane.f32.xlu0 %v1709
    %v1711 = vpop.xlane.xlu0 %1710
    %v1712 = vmul.f32 %v1708, %v102
    %v1713 = vmul.f32 %v1711, %v102
    %v1714 = vsub.f32 %v1702, %v1712
    %v1715 = vsub.f32 %v1703, %v1713
    %v1716 = vmul.f32 %v1714, %v1714
    %v1717 = vmul.f32 %v1715, %v1715
    %v1718 = vsel %vm95, %v1716, 0.0
    %1719 = vadd.xlane.f32.xlu0 %v1718
    %v1720 = vpop.xlane.xlu0 %1719
    %v1721 = vsel %vm95, %v1717, 0.0
    %1722 = vadd.xlane.f32.xlu0 %v1721
    %v1723 = vpop.xlane.xlu0 %1722
    %v1724 = vmul.f32 %v1720, %v102
    %v1725 = vmul.f32 %v1723, %v102
    %v1726 = vadd.f32 %v1724, 1e-05
    %v1727 = vadd.f32 %v1725, 1e-05
    %v1728 = vrsqrt.pop %v1726
    %v1729 = vrsqrt.pop %v1727
    %v1730 = vmul.f32 %v1714, %v1728
    %v1731 = vmul.f32 %v1715, %v1729
    %v1732 = vlaneseq
    %v1733 = vshrl.u32 %v1732, 7
    %v1734 = vsub.s32 0, %v1733
    %v1735 = vrot.slane %v1704, %v1734
    %v1736 = vmul.f32 %v1730, %v1735
    %v1737 = vmul.f32 %v1731, %v1735
    %v1738 = vlaneseq
    %v1739 = vshrl.u32 %v1738, 7
    %v1740 = vsub.s32 0, %v1739
    %v1741 = vrot.slane %v1705, %v1740
    %v1742 = vadd.f32 %v1736, %v1741
    %v1743 = vadd.f32 %v1737, %v1741
    %v1744 = vpack.c.bf16 %v1743, %v1742
    %s1745 = scalar_lea.vmem %s4, 16
    %v1746 = vld [vmem:[%s1745] sm:$0xf]
    %v1747 = vld [vmem:[%s1745 + $0x4] sm:$0xf]
    %v1748 = vld [vmem:[%s1745 + $0x8] sm:$0xf]
    %v1749 = vld [vmem:[%s1745 + $0xc] sm:$0xf]
    %v1750 = vld [vmem:[%s6 + $0xa] sm:$0x1]
    %v1751 = vlaneseq
    %v1752 = vshrl.u32 %v1751, 7
    %v1753 = vsub.s32 0, %v1752
    %v1754 = vrot.slane %v1750, %v1753
    %v1759 = vunpack.c.l.b16 %v1746
    %v1760 = vunpack.c.l.b16 %v1747
    %v1761 = vunpack.c.l.b16 %v1748
    %v1762 = vunpack.c.l.b16 %v1749
    %v1763 = vpack.c.b16 %v1760, %v1759
    %v1764 = vpack.c.b16 %v1762, %v1761
    %v1768 = vsel %vm95, %v1744, 0
    %1770 = vmatprep.subr.bf16.mxu0 0
    %1771 = vmatpush1.bf16.msra.mxu0 0
    %1772 = vmatprep.subr.bf16.mxu0 0
    %1773 = vmatpush1.bf16.msra.mxu0 0
    %1774 = vmatprep.subr.bf16.mxu0 0
    %1775 = vmatpush1.bf16.msra.mxu0 0
    %1776 = vmatprep.subr.bf16.mxu0 0
    %1777 = vmatpush1.bf16.msra.mxu0 0
    %1778 = vmatprep.subr.bf16.mxu0 0
    %1779 = vmatpush1.bf16.msra.mxu0 0
    %1780 = vmatprep.subr.bf16.mxu0 0
    %1781 = vmatpush1.bf16.msra.mxu0 0
    %1782 = vmatprep.subr.bf16.mxu0 0
    %1783 = vmatpush1.bf16.msra.mxu0 %v1764
    %1784 = vmatprep.subr.bf16.mxu0 0
    %1785 = vmatpush1.bf16.msra.mxu0 %v1763
    %1786 = vmatprep.subr.bf16.mxu0 0
    %1787 = vmatpush2.bf16.msra.mxu0 0
    %1788 = vmatprep.subr.bf16.mxu0 0
    %1789 = vmatpush2.bf16.msra.mxu0 0
    %1790 = vmatprep.subr.bf16.mxu0 0
    %1791 = vmatpush2.bf16.msra.mxu0 0
    %1792 = vmatprep.subr.bf16.mxu0 0
    %1793 = vmatpush2.bf16.msra.mxu0 0
    %1794 = vmatprep.subr.bf16.mxu0 0
    %1795 = vmatpush2.bf16.msra.mxu0 0
    %1796 = vmatprep.subr.bf16.mxu0 0
    %1797 = vmatpush2.bf16.msra.mxu0 0
    %1798 = vmatprep.subr.bf16.mxu0 0
    %1799 = vmatpush2.bf16.msra.mxu0 0
    %1800 = vmatprep.subr.bf16.mxu0 0
    %1801 = vmatpush2.bf16.msra.mxu0 0
    %1802 = vmatprep.mubr.bf16.mxu0 0
    %1803 = vmatmul.mubr.bf16.gmra.mxu0 %v1768
    %v1804 = vpop.f32.mrf.mxu0
    %v1805 = vadd.f32 %v1754, %v1804
    %v1806 = vpop.f32.mrf.mxu0
    %v1807 = vpop.f32.mrf.mxu0
    %v1808 = vadd.f32 %v1754, %v1807
    %v1809 = vpop.f32.mrf.mxu0
    %1810 = vdwg.mxu0
    %v1811 = vmul.f32 %v1805, 0.5
    %v1812 = vmul.f32 %v1808, 0.5
    %v1813 = vmul.f32 %v1805, 0.70710677
    %v1814 = vmul.f32 %v1808, 0.70710677
    %v1815 = verf.f32.pop %v1813
    %v1816 = verf.f32.pop %v1814
    %v1817 = vadd.f32 %v1815, 1.0
    %v1818 = vadd.f32 %v1816, 1.0
    %v1819 = vmul.f32 %v1811, %v1817
    %v1820 = vmul.f32 %v1812, %v1818
    %v1821 = vpack.c.bf16 %v1820, %v1819
    %s1822 = scalar_lea.vmem %s5, 32
    %v1823 = vld [vmem:[%s1822] sm:$0xf]
    %v1824 = vld [vmem:[%s1822 + $0x4] sm:$0xf]
    %v1825 = vld [vmem:[%s1822 + $0x8] sm:$0xf]
    %v1826 = vld [vmem:[%s1822 + $0xc] sm:$0xf]
    %v1827 = vld [vmem:[%s1822 + $0x10] sm:$0xf]
    %v1828 = vld [vmem:[%s1822 + $0x14] sm:$0xf]
    %v1829 = vld [vmem:[%s1822 + $0x18] sm:$0xf]
    %v1830 = vld [vmem:[%s1822 + $0x1c] sm:$0xf]
    %v1831 = vld [vmem:[%s6 + $0xb] sm:$0x1]
    %v1832 = vlaneseq
    %v1833 = vshrl.u32 %v1832, 7
    %v1834 = vsub.s32 0, %v1833
    %v1835 = vrot.slane %v1831, %v1834
    %v1844 = vunpack.c.l.b16 %v1823
    %v1845 = vunpack.c.l.b16 %v1824
    %v1846 = vunpack.c.l.b16 %v1825
    %v1847 = vunpack.c.l.b16 %v1826
    %v1848 = vunpack.c.l.b16 %v1827
    %v1849 = vunpack.c.l.b16 %v1828
    %v1850 = vunpack.c.l.b16 %v1829
    %v1851 = vunpack.c.l.b16 %v1830
    %v1852 = vpack.c.b16 %v1845, %v1844
    %v1853 = vpack.c.b16 %v1847, %v1846
    %v1854 = vpack.c.b16 %v1849, %v1848
    %v1855 = vpack.c.b16 %v1851, %v1850
    %v1861 = vsel %vm580, %v1821, 0
    %1863 = vmatprep.subr.bf16.mxu0 0
    %1864 = vmatpush1.bf16.msra.mxu0 0
    %1865 = vmatprep.subr.bf16.mxu0 0
    %1866 = vmatpush1.bf16.msra.mxu0 0
    %1867 = vmatprep.subr.bf16.mxu0 0
    %1868 = vmatpush1.bf16.msra.mxu0 0
    %1869 = vmatprep.subr.bf16.mxu0 0
    %1870 = vmatpush1.bf16.msra.mxu0 0
    %1871 = vmatprep.subr.bf16.mxu0 0
    %1872 = vmatpush1.bf16.msra.mxu0 %v1855
    %1873 = vmatprep.subr.bf16.mxu0 0
    %1874 = vmatpush1.bf16.msra.mxu0 %v1854
    %1875 = vmatprep.subr.bf16.mxu0 0
    %1876 = vmatpush1.bf16.msra.mxu0 %v1853
    %1877 = vmatprep.subr.bf16.mxu0 0
    %1878 = vmatpush1.bf16.msra.mxu0 %v1852
    %1879 = vmatprep.subr.bf16.mxu0 0
    %1880 = vmatpush2.bf16.msra.mxu0 0
    %1881 = vmatprep.subr.bf16.mxu0 0
    %1882 = vmatpush2.bf16.msra.mxu0 0
    %1883 = vmatprep.subr.bf16.mxu0 0
    %1884 = vmatpush2.bf16.msra.mxu0 0
    %1885 = vmatprep.subr.bf16.mxu0 0
    %1886 = vmatpush2.bf16.msra.mxu0 0
    %1887 = vmatprep.subr.bf16.mxu0 0
    %1888 = vmatpush2.bf16.msra.mxu0 0
    %1889 = vmatprep.subr.bf16.mxu0 0
    %1890 = vmatpush2.bf16.msra.mxu0 0
    %1891 = vmatprep.subr.bf16.mxu0 0
    %1892 = vmatpush2.bf16.msra.mxu0 0
    %1893 = vmatprep.subr.bf16.mxu0 0
    %1894 = vmatpush2.bf16.msra.mxu0 0
    %1895 = vmatprep.mubr.bf16.mxu0 0
    %1896 = vmatmul.mubr.bf16.gmra.mxu0 %v1861
    %v1897 = vpop.f32.mrf.mxu0
    %v1898 = vadd.f32 %v1835, %v1897
    %v1899 = vpop.f32.mrf.mxu0
    %v1900 = vpop.f32.mrf.mxu0
    %v1901 = vadd.f32 %v1835, %v1900
    %v1902 = vpop.f32.mrf.mxu0
    %1903 = vdwg.mxu0
    %v1904 = vpack.c.bf16 %v1901, %v1898
    %v1905 = vld [vmem:[%s7 + $0x80] sm:$0xff]
    %v1906 = vld [vmem:[%s7 + $0x88] sm:$0xff]
    %v1907 = vld [vmem:[%s7 + $0x90] sm:$0xff]
    %v1908 = vld [vmem:[%s7 + $0x98] sm:$0xff]
    %v1909 = vpack.c.bf16 %v1906, %v1905
    %v1910 = vpack.c.bf16 %v1908, %v1907
    %v1912 = vsel %vm95, %v1904, 0
    %1914 = vmatprep.subr.bf16.mxu0 0
    %1915 = vmatpush1.bf16.msra.mxu0 0
    %1916 = vmatprep.subr.bf16.mxu0 0
    %1917 = vmatpush1.bf16.msra.mxu0 0
    %1918 = vmatprep.subr.bf16.mxu0 0
    %1919 = vmatpush1.bf16.msra.mxu0 0
    %1920 = vmatprep.subr.bf16.mxu0 0
    %1921 = vmatpush1.bf16.msra.mxu0 0
    %1922 = vmatprep.subr.bf16.mxu0 0
    %1923 = vmatpush1.bf16.msra.mxu0 0
    %1924 = vmatprep.subr.bf16.mxu0 0
    %1925 = vmatpush1.bf16.msra.mxu0 0
    %1926 = vmatprep.subr.bf16.mxu0 0
    %1927 = vmatpush1.bf16.msra.mxu0 %v1910
    %1928 = vmatprep.subr.bf16.mxu0 0
    %1929 = vmatpush1.bf16.msra.mxu0 %v1909
    %1930 = vmatprep.subr.bf16.mxu0 0
    %1931 = vmatpush2.bf16.msra.mxu0 0
    %1932 = vmatprep.subr.bf16.mxu0 0
    %1933 = vmatpush2.bf16.msra.mxu0 0
    %1934 = vmatprep.subr.bf16.mxu0 0
    %1935 = vmatpush2.bf16.msra.mxu0 0
    %1936 = vmatprep.subr.bf16.mxu0 0
    %1937 = vmatpush2.bf16.msra.mxu0 0
    %1938 = vmatprep.subr.bf16.mxu0 0
    %1939 = vmatpush2.bf16.msra.mxu0 0
    %1940 = vmatprep.subr.bf16.mxu0 0
    %1941 = vmatpush2.bf16.msra.mxu0 0
    %1942 = vmatprep.subr.bf16.mxu0 0
    %1943 = vmatpush2.bf16.msra.mxu0 0
    %1944 = vmatprep.subr.bf16.mxu0 0
    %1945 = vmatpush2.bf16.msra.mxu0 0
    %1946 = vmatprep.mubr.bf16.mxu0 0
    %1947 = vmatmul.mubr.bf16.gmra.mxu0 %v1912
    %v1948 = vpop.f32.mrf.mxu0
    %v1949 = vadd.f32 0.0, %v1948
    %v1950 = vpop.f32.mrf.mxu0
    %v1951 = vpop.f32.mrf.mxu0
    %v1952 = vadd.f32 0.0, %v1951
    %v1953 = vpop.f32.mrf.mxu0
    %1954 = vdwg.mxu0
    %v1955 = vld [vmem:[%s7 + $0xb0] sm:$0x3]
    %v1956 = vld [vmem:[%s7 + $0xa0] sm:$0xff]
    %v1957 = vld [vmem:[%s7 + $0xa8] sm:$0xff]
    %v1958 = vmul.f32 %v1949, %v1956
    %v1959 = vmul.f32 %v1952, %v1957
    %v1961 = vsel %vm48, %v1955, 0
    %1963 = vmatprep.subr.mxu0 0.0
    %1964 = vmatpush1.msra.mxu0 0.0
    %1965 = vmatprep.subr.mxu0 0.0
    %1966 = vmatpush1.msra.mxu0 0.0
    %1967 = vmatprep.subr.mxu0 0.0
    %1968 = vmatpush1.msra.mxu0 0.0
    %1969 = vmatprep.subr.mxu0 0.0
    %1970 = vmatpush1.msra.mxu0 0.0
    %1971 = vmatprep.subr.mxu0 0.0
    %1972 = vmatpush1.msra.mxu0 0.0
    %1973 = vmatprep.subr.mxu0 0.0
    %1974 = vmatpush1.msra.mxu0 0.0
    %1975 = vmatprep.subr.mxu0 0.0
    %1976 = vmatpush1.msra.mxu0 0.0
    %1977 = vmatprep.subr.mxu0 0.0
    %1978 = vmatpush1.msra.mxu0 0.0
    %1979 = vmatprep.subr.mxu0 0.0
    %1980 = vmatpush1.msra.mxu0 0.0
    %1981 = vmatprep.subr.mxu0 0.0
    %1982 = vmatpush1.msra.mxu0 0.0
    %1983 = vmatprep.subr.mxu0 0.0
    %1984 = vmatpush1.msra.mxu0 0.0
    %1985 = vmatprep.subr.mxu0 0.0
    %1986 = vmatpush1.msra.mxu0 0.0
    %1987 = vmatprep.subr.mxu0 0.0
    %1988 = vmatpush1.msra.mxu0 0.0
    %1989 = vmatprep.subr.mxu0 0.0
    %1990 = vmatpush1.msra.mxu0 0.0
    %1991 = vmatprep.subr.mxu0 0.0
    %1992 = vmatpush1.msra.mxu0 %v1959
    %1993 = vmatprep.subr.mxu0 0.0
    %1994 = vmatpush1.msra.mxu0 %v1958
    %1995 = vmatprep.subr.mxu0 0.0
    %1996 = vmatpush2.msra.mxu0 0.0
    %1997 = vmatprep.subr.mxu0 0.0
    %1998 = vmatpush2.msra.mxu0 0.0
    %1999 = vmatprep.subr.mxu0 0.0
    %2000 = vmatpush2.msra.mxu0 0.0
    %2001 = vmatprep.subr.mxu0 0.0
    %2002 = vmatpush2.msra.mxu0 0.0
    %2003 = vmatprep.subr.mxu0 0.0
    %2004 = vmatpush2.msra.mxu0 0.0
    %2005 = vmatprep.subr.mxu0 0.0
    %2006 = vmatpush2.msra.mxu0 0.0
    %2007 = vmatprep.subr.mxu0 0.0
    %2008 = vmatpush2.msra.mxu0 0.0
    %2009 = vmatprep.subr.mxu0 0.0
    %2010 = vmatpush2.msra.mxu0 0.0
    %2011 = vmatprep.subr.mxu0 0.0
    %2012 = vmatpush2.msra.mxu0 0.0
    %2013 = vmatprep.subr.mxu0 0.0
    %2014 = vmatpush2.msra.mxu0 0.0
    %2015 = vmatprep.subr.mxu0 0.0
    %2016 = vmatpush2.msra.mxu0 0.0
    %2017 = vmatprep.subr.mxu0 0.0
    %2018 = vmatpush2.msra.mxu0 0.0
    %2019 = vmatprep.subr.mxu0 0.0
    %2020 = vmatpush2.msra.mxu0 0.0
    %2021 = vmatprep.subr.mxu0 0.0
    %2022 = vmatpush2.msra.mxu0 0.0
    %2023 = vmatprep.subr.mxu0 0.0
    %2024 = vmatpush2.msra.mxu0 0.0
    %2025 = vmatprep.subr.mxu0 0.0
    %2026 = vmatpush2.msra.mxu0 0.0
    %2027 = vmatprep.mubr.f32.mxu0 0.0
    %2028 = vmatmul.mubr.f32.gmra.mxu0 %v1961
    %v2029 = vpop.f32.mrf.mxu0
    %v2030 = vadd.f32 0.0, %v2029
    %v2031 = vpop.f32.mrf.mxu0
    %2032 = vdwg.mxu0
    %v2033 = vld [vmem:[%s7 + $0xb8] sm:$0xff]
    %v2034 = vld [vmem:[%s7 + $0xc0] sm:$0xff]
    %v2035 = vld [vmem:[%s7 + $0xc8] sm:$0xff]
    %v2036 = vld [vmem:[%s6 + $0xc] sm:$0x1]
    %v2037 = vlaneseq
    %v2038 = vshrl.u32 %v2037, 7
    %v2039 = vsub.s32 0, %v2038
    %v2040 = vrot.slane %v2036, %v2039
    %vm2041 = vcmask 195584
    %v2043 = vsel %vm2041, %v2030, 0
    %2045 = vmatprep.subr.mxu0 0.0
    %2046 = vmatpush1.msra.mxu0 0.0
    %2047 = vmatprep.subr.mxu0 0.0
    %2048 = vmatpush1.msra.mxu0 0.0
    %2049 = vmatprep.subr.mxu0 0.0
    %2050 = vmatpush1.msra.mxu0 0.0
    %2051 = vmatprep.subr.mxu0 0.0
    %2052 = vmatpush1.msra.mxu0 0.0
    %2053 = vmatprep.subr.mxu0 0.0
    %2054 = vmatpush1.msra.mxu0 0.0
    %2055 = vmatprep.subr.mxu0 0.0
    %2056 = vmatpush1.msra.mxu0 0.0
    %2057 = vmatprep.subr.mxu0 0.0
    %2058 = vmatpush1.msra.mxu0 0.0
    %2059 = vmatprep.subr.mxu0 0.0
    %2060 = vmatpush1.msra.mxu0 0.0
    %2061 = vmatprep.subr.mxu0 0.0
    %2062 = vmatpush1.msra.mxu0 0.0
    %2063 = vmatprep.subr.mxu0 0.0
    %2064 = vmatpush1.msra.mxu0 0.0
    %2065 = vmatprep.subr.mxu0 0.0
    %2066 = vmatpush1.msra.mxu0 0.0
    %2067 = vmatprep.subr.mxu0 0.0
    %2068 = vmatpush1.msra.mxu0 0.0
    %2069 = vmatprep.subr.mxu0 0.0
    %2070 = vmatpush1.msra.mxu0 0.0
    %2071 = vmatprep.subr.mxu0 0.0
    %2072 = vmatpush1.msra.mxu0 %v2035
    %2073 = vmatprep.subr.mxu0 0.0
    %2074 = vmatpush1.msra.mxu0 %v2034
    %2075 = vmatprep.subr.mxu0 0.0
    %2076 = vmatpush1.msra.mxu0 %v2033
    %2077 = vmatprep.subr.mxu0 0.0
    %2078 = vmatpush2.msra.mxu0 0.0
    %2079 = vmatprep.subr.mxu0 0.0
    %2080 = vmatpush2.msra.mxu0 0.0
    %2081 = vmatprep.subr.mxu0 0.0
    %2082 = vmatpush2.msra.mxu0 0.0
    %2083 = vmatprep.subr.mxu0 0.0
    %2084 = vmatpush2.msra.mxu0 0.0
    %2085 = vmatprep.subr.mxu0 0.0
    %2086 = vmatpush2.msra.mxu0 0.0
    %2087 = vmatprep.subr.mxu0 0.0
    %2088 = vmatpush2.msra.mxu0 0.0
    %2089 = vmatprep.subr.mxu0 0.0
    %2090 = vmatpush2.msra.mxu0 0.0
    %2091 = vmatprep.subr.mxu0 0.0
    %2092 = vmatpush2.msra.mxu0 0.0
    %2093 = vmatprep.subr.mxu0 0.0
    %2094 = vmatpush2.msra.mxu0 0.0
    %2095 = vmatprep.subr.mxu0 0.0
    %2096 = vmatpush2.msra.mxu0 0.0
    %2097 = vmatprep.subr.mxu0 0.0
    %2098 = vmatpush2.msra.mxu0 0.0
    %2099 = vmatprep.subr.mxu0 0.0
    %2100 = vmatpush2.msra.mxu0 0.0
    %2101 = vmatprep.subr.mxu0 0.0
    %2102 = vmatpush2.msra.mxu0 0.0
    %2103 = vmatprep.subr.mxu0 0.0
    %2104 = vmatpush2.msra.mxu0 0.0
    %2105 = vmatprep.subr.mxu0 0.0
    %2106 = vmatpush2.msra.mxu0 0.0
    %2107 = vmatprep.subr.mxu0 0.0
    %2108 = vmatpush2.msra.mxu0 0.0
    %2109 = vmatprep.mubr.f32.mxu0 0.0
    %2110 = vmatmul.mubr.f32.gmra.mxu0 %v2043
    %v2111 = vpop.f32.mrf.mxu0
    %v2112 = vadd.f32 %v2040, %v2111
    %v2113 = vpop.f32.mrf.mxu0
    %2114 = vdwg.mxu0
    %v2115 = vtanh.pop %v2112
    %vm2116 = vcmask 17408
    %2117 = vst.msk [vmem:[#allocation2] sm:$0x3] %vm2116, %v2115
    // Predicated region
    $region34: #{tpu_custom_call.1} parent=1 // pred_check
      _
    $region35: #{tpu_custom_call.1} parent=1 // pred_check_branch
      %2119 = sbr.rel (0) target = $region37
    $region36: #{tpu_custom_call.1} parent=1 // pred_region
      %s2121 = ssub.s32 32, 32
      %2122 = vsyncadd [#allocation3], %s2121
      %s2124 = sshll.u32 [#allocation2], 4
      %s2125 = int_to_ptr.vmem [resolvable:$true] %s2124
      %2127 = dma.vmem_to_hbm [thread:$0]  %s2125, 32, %s8, [#allocation3]
    $region37: #{tpu_custom_call.1} parent=1 // pred_fallthru
      _
    // Predicated region
    $region38: #{tpu_custom_call.1} parent=1 // pred_check
      _
    $region39: #{tpu_custom_call.1} parent=1 // pred_check_branch
      %2129 = sbr.rel (0) target = $region41
    $region40: #{tpu_custom_call.1} parent=1 // pred_region
      %2130 = dma.done [#allocation3], 32
    $region41: #{tpu_custom_call.1} parent=1 // pred_fallthru
      _
    %2131 = vsyncpa [#allocation3], 1

</llo_original>
